<compile_context>
chip_gen: v6e
topology: v6e:2x2x1
jax: 0.10.0
libtpu: 0.0.40
codegen_flags: <defaults>
</compile_context>

<pallas_src>
from functools import partial

import jax
import jax.numpy as jnp
from jax.experimental import pallas as pl
from jax.experimental.pallas import tpu as pltpu

# Padded feature dims (multiples of 128).
F_IN = 896    # 784 -> 896
F1 = 256      # 196 -> 256
F2 = 128      # 49  -> 128
FZ = 128      # 2   -> 128
F_OUT = 896   # 784 -> 896

_BN_EPS = 1e-5
_CPARAMS = pltpu.CompilerParams(dimension_semantics=("parallel",))


def _round_up(x, m):
    return (x + m - 1) // m * m


def _row_mask(tb, b_real):
    """(tb, 1) float32 mask: 1.0 for real batch rows of this tile, 0.0 for pad rows."""
    rows = jax.lax.broadcasted_iota(jnp.int32, (tb, 1), 0) + pl.program_id(0) * tb
    return (rows < b_real).astype(jnp.float32)


# ---------------------------------------------------------------------------
# Kernel 1: h1 = x @ W1 + b1  (bf16 matmul, f32 acc) + masked BN1 partial sums
# ---------------------------------------------------------------------------
def _enc1_kernel(x_ref, w1_ref, b1_ref, h1_ref, s1_ref, ss1_ref, *, b_real):
    tb = x_ref.shape[0]
    h = jnp.dot(x_ref[...], w1_ref[...],
                preferred_element_type=jnp.float32) + b1_ref[...]
    h1_ref[...] = h
    m = _row_mask(tb, b_real)
    hm = h * m
    s1_ref[0] = jnp.sum(hm, axis=0, keepdims=True)        # per-feature sum
    ss1_ref[0] = jnp.sum(hm * h, axis=0, keepdims=True)   # per-feature sum of squares


# ---------------------------------------------------------------------------
# Kernel 2: a1 = relu(BN1(h1)); h2 = a1 @ W2 + b2 + masked BN2 partial sums
# ---------------------------------------------------------------------------
def _enc2_kernel(h1_ref, scale1_ref, shift1_ref, w2_ref, b2_ref,
                 h2_ref, s2_ref, ss2_ref, *, b_real):
    tb = h1_ref.shape[0]
    a = jnp.maximum(h1_ref[...] * scale1_ref[...] + shift1_ref[...], 0.0)
    h = jnp.dot(a.astype(jnp.bfloat16), w2_ref[...],
                preferred_element_type=jnp.float32) + b2_ref[...]
    h2_ref[...] = h
    m = _row_mask(tb, b_real)
    hm = h * m
    s2_ref[0] = jnp.sum(hm, axis=0, keepdims=True)
    ss2_ref[0] = jnp.sum(hm * h, axis=0, keepdims=True)


# ---------------------------------------------------------------------------
# Kernel 3: BN2 + ReLU, fused mu|logvar head, reparameterize, decoder, sigmoid,
#           per-row KL.
# ---------------------------------------------------------------------------
def _dec_kernel(h2_ref, scale2_ref, shift2_ref, eps_ref,
                wmv_ref, bmv_ref, wd1_ref, bd1_ref, wd2_ref, bd2_ref,
                wd3_ref, bd3_ref, out_ref, kl_ref):
    a = jnp.maximum(h2_ref[...] * scale2_ref[...] + shift2_ref[...], 0.0)

    # Fused mu | logvar projection: lanes [0:128) = mu block, [128:256) = logvar block.
    y = jnp.dot(a.astype(jnp.bfloat16), wmv_ref[...],
                preferred_element_type=jnp.float32) + bmv_ref[...]
    mu = y[:, :FZ]
    logvar = y[:, FZ:]

    # Reparameterize: z = eps * exp(logvar/2) + mu   (pad lanes stay exactly 0).
    std = jnp.exp(0.5 * logvar)
    z = eps_ref[...] * std + mu

    # Decoder.
    d = jnp.maximum(jnp.dot(z.astype(jnp.bfloat16), wd1_ref[...],
                            preferred_element_type=jnp.float32) + bd1_ref[...], 0.0)
    d = jnp.maximum(jnp.dot(d.astype(jnp.bfloat16), wd2_ref[...],
                            preferred_element_type=jnp.float32) + bd2_ref[...], 0.0)
    logits = jnp.dot(d.astype(jnp.bfloat16), wd3_ref[...],
                     preferred_element_type=jnp.float32) + bd3_ref[...]
    out_ref[...] = pl.reciprocal(1.0 + jnp.exp(-logits), approx=True)

    # Per-row KL (pad lanes contribute 1 + 0 - 0 - 1 = 0; pad rows sliced off in wrapper).
    kl_ref[...] = -0.5 * jnp.sum(1.0 + logvar - mu * mu - std * std,
                                 axis=1, keepdims=True)


# ---------------------------------------------------------------------------
# Parameter init (PyTorch Linear default init), padded & pre-transposed, bf16 weights.
# ---------------------------------------------------------------------------
def init_params(key):
    def lin(k, fan_in, fan_out, pad_in, pad_out):
        k1, k2 = jax.random.split(k)
        bound = 1.0 / (fan_in ** 0.5)
        w = jax.random.uniform(k1, (fan_in, fan_out), jnp.float32, -bound, bound)
        b = jax.random.uniform(k2, (fan_out,), jnp.float32, -bound, bound)
        w_p = jnp.zeros((pad_in, pad_out), jnp.float32).at[:fan_in, :fan_out].set(w)
        b_p = jnp.zeros((1, pad_out), jnp.float32).at[0, :fan_out].set(b)
        return w_p.astype(jnp.bfloat16), b_p

    keys = jax.random.split(key, 7)
    w1, b1 = lin(keys[0], 784, 196, F_IN, F1)
    w2, b2 = lin(keys[1], 196, 49, F1, F2)
    wmu, bmu = lin(keys[2], 49, 2, F2, FZ)
    wsg, bsg = lin(keys[3], 49, 2, F2, FZ)
    wd1, bd1 = lin(keys[4], 2, 49, FZ, F2)
    wd2, bd2 = lin(keys[5], 49, 196, F2, F1)
    wd3, bd3 = lin(keys[6], 196, 784, F1, F_OUT)

    return {
        "w1": w1, "b1": b1,
        "g1": jnp.ones((1, F1), jnp.float32), "beta1": jnp.zeros((1, F1), jnp.float32),
        "w2": w2, "b2": b2,
        "g2": jnp.ones((1, F2), jnp.float32), "beta2": jnp.zeros((1, F2), jnp.float32),
        # Fused mu|logvar head: (F2, 2*FZ), lanes [0:2]=mu weights, [128:130]=logvar weights.
        "wmv": jnp.concatenate([wmu, wsg], axis=1),
        "bmv": jnp.concatenate([bmu, bsg], axis=1),
        "wd1": wd1, "bd1": bd1,
        "wd2": wd2, "bd2": bd2,
        "wd3": wd3, "bd3": bd3,
    }


def _bn_affine(s, ss, gamma, beta, b_real):
    """Combine per-tile partial sums into BN scale/shift (training-mode, biased var)."""
    mean = jnp.sum(s, axis=0) / b_real                                   # (1, F)
    var = jnp.maximum(jnp.sum(ss, axis=0) / b_real - mean * mean, 0.0)   # (1, F)
    scale = gamma * jax.lax.rsqrt(var + _BN_EPS)
    shift = beta - mean * scale
    return scale, shift


# ---------------------------------------------------------------------------
# Forward wrapper
# ---------------------------------------------------------------------------
def mnist_vae_forward(x, eps, params):
    """x: (B, 1, 28, 28) float32, eps: (B, 2) float32 (the randn_like draw)."""
    B = x.shape[0]
    x_flat = x.reshape(B, 784)

    # Batch tile: multiple of 8 sublanes, up to 512 rows (VMEM-safe on v5e/v6e/v7x).
    TB = 512
    if B < TB:
        TB = max(8, _round_up(B, 8))
    B_pad = _round_up(B, TB)
    n_tiles = B_pad // TB

    # Pad to lane-dense shapes; inputs to matmuls carried as bf16 (halves DMA bytes).
    x_p = jnp.pad(x_flat.astype(jnp.bfloat16), ((0, B_pad - B), (0, F_IN - 784)))
    eps_p = jnp.pad(eps.astype(jnp.float32), ((0, B_pad - B), (0, FZ - 2)))

    # ---- stage 1: Linear(784,196) + BN1 partial sums ----
    h1, s1, ss1 = pl.pallas_call(
        partial(_enc1_kernel, b_real=B),
        grid=(n_tiles,),
        in_specs=[
            pl.BlockSpec((TB, F_IN), lambda i: (i, 0)),
            pl.BlockSpec((F_IN, F1), lambda i: (0, 0)),
            pl.BlockSpec((1, F1), lambda i: (0, 0)),
        ],
        out_specs=(
            pl.BlockSpec((TB, F1), lambda i: (i, 0)),
            pl.BlockSpec((1, 1, F1), lambda i: (i, 0, 0)),
            pl.BlockSpec((1, 1, F1), lambda i: (i, 0, 0)),
        ),
        out_shape=(
            jax.ShapeDtypeStruct((B_pad, F1), jnp.float32),
            jax.ShapeDtypeStruct((n_tiles, 1, F1), jnp.float32),
            jax.ShapeDtypeStruct((n_tiles, 1, F1), jnp.float32),
        ),
        compiler_params=_CPARAMS,
    )(x_p, params["w1"], params["b1"])

    scale1, shift1 = _bn_affine(s1, ss1, params["g1"], params["beta1"], B)

    # ---- stage 2: BN1 + ReLU + Linear(196,49) + BN2 partial sums ----
    h2, s2, ss2 = pl.pallas_call(
        partial(_enc2_kernel, b_real=B),
        grid=(n_tiles,),
        in_specs=[
            pl.BlockSpec((TB, F1), lambda i: (i, 0)),
            pl.BlockSpec((1, F1), lambda i: (0, 0)),
            pl.BlockSpec((1, F1), lambda i: (0, 0)),
            pl.BlockSpec((F1, F2), lambda i: (0, 0)),
            pl.BlockSpec((1, F2), lambda i: (0, 0)),
        ],
        out_specs=(
            pl.BlockSpec((TB, F2), lambda i: (i, 0)),
            pl.BlockSpec((1, 1, F2), lambda i: (i, 0, 0)),
            pl.BlockSpec((1, 1, F2), lambda i: (i, 0, 0)),
        ),
        out_shape=(
            jax.ShapeDtypeStruct((B_pad, F2), jnp.float32),
            jax.ShapeDtypeStruct((n_tiles, 1, F2), jnp.float32),
            jax.ShapeDtypeStruct((n_tiles, 1, F2), jnp.float32),
        ),
        compiler_params=_CPARAMS,
    )(h1, scale1, shift1, params["w2"], params["b2"])

    scale2, shift2 = _bn_affine(s2, ss2, params["g2"], params["beta2"], B)

    # ---- stage 3: BN2 + ReLU, heads, reparameterize, decoder, sigmoid, KL rows ----
    out_p, kl_rows = pl.pallas_call(
        _dec_kernel,
        grid=(n_tiles,),
        in_specs=[
            pl.BlockSpec((TB, F2), lambda i: (i, 0)),
            pl.BlockSpec((1, F2), lambda i: (0, 0)),
            pl.BlockSpec((1, F2), lambda i: (0, 0)),
            pl.BlockSpec((TB, FZ), lambda i: (i, 0)),
            pl.BlockSpec((F2, 2 * FZ), lambda i: (0, 0)),
            pl.BlockSpec((1, 2 * FZ), lambda i: (0, 0)),
            pl.BlockSpec((FZ, F2), lambda i: (0, 0)),
            pl.BlockSpec((1, F2), lambda i: (0, 0)),
            pl.BlockSpec((F2, F1), lambda i: (0, 0)),
            pl.BlockSpec((1, F1), lambda i: (0, 0)),
            pl.BlockSpec((F1, F_OUT), lambda i: (0, 0)),
            pl.BlockSpec((1, F_OUT), lambda i: (0, 0)),
        ],
        out_specs=(
            pl.BlockSpec((TB, F_OUT), lambda i: (i, 0)),
            pl.BlockSpec((TB, 1), lambda i: (i, 0)),
        ),
        out_shape=(
            jax.ShapeDtypeStruct((B_pad, F_OUT), jnp.float32),
            jax.ShapeDtypeStruct((B_pad, 1), jnp.float32),
        ),
        compiler_params=_CPARAMS,
    )(h2, scale2, shift2, eps_p,
      params["wmv"], params["bmv"],
      params["wd1"], params["bd1"],
      params["wd2"], params["bd2"],
      params["wd3"], params["bd3"])

    recon = out_p[:B, :784]
    kl = jnp.sum(kl_rows[:B, 0]) / B
    return recon, kl


if __name__ == "__main__":
    root = jax.random.PRNGKey(0)
    k_params, k_x, k_eps = jax.random.split(root, 3)

    params = init_params(k_params)

    B = 2
    x = jax.random.normal(k_x, (B, 1, 28, 28), jnp.float32)   # MNIST-shaped input
    eps = jax.random.normal(k_eps, (B, 2), jnp.float32)       # eps for reparameterize

    recon, kl_loss = jax.jit(mnist_vae_forward)(x, eps, params)
    jax.block_until_ready((recon, kl_loss))

    assert recon.shape == (B, 784)
    assert kl_loss.shape == ()
    assert bool(jnp.all(jnp.isfinite(recon)))
    assert bool(jnp.isfinite(kl_loss))
    print("KERNEL_OK")
</pallas_src>

<mosaic_0001>
module attributes {stable_mosaic.version = 11 : i64} {
  func.func @_enc2_kernel(%arg0: i32, %arg1: memref<8x256xf32, #tpu.memory_space<vmem>>, %arg2: memref<1x256xf32, #tpu.memory_space<vmem>>, %arg3: memref<1x256xf32, #tpu.memory_space<vmem>>, %arg4: memref<256x128xbf16, #tpu.memory_space<vmem>>, %arg5: memref<1x128xf32, #tpu.memory_space<vmem>>, %arg6: memref<8x128xf32, #tpu.memory_space<vmem>>, %arg7: memref<1x1x128xf32, #tpu.memory_space<vmem>>, %arg8: memref<1x1x128xf32, #tpu.memory_space<vmem>>) attributes {dimension_semantics = [#tpu.dimension_semantics<parallel>], iteration_bounds = array<i64: 1>, scalar_prefetch = 0 : i64, scratch_operands = 0 : i64, tpu.core_type = #tpu.core_type<tc>, window_params = [{transform_indices = @transform_0, window_bounds = array<i64: 8, 256>}, {pipeline_mode = #tpu.pipeline_mode<synchronous>, transform_indices = @transform_1, window_bounds = array<i64: 1, 256>}, {pipeline_mode = #tpu.pipeline_mode<synchronous>, transform_indices = @transform_2, window_bounds = array<i64: 1, 256>}, {pipeline_mode = #tpu.pipeline_mode<synchronous>, transform_indices = @transform_3, window_bounds = array<i64: 256, 128>}, {pipeline_mode = #tpu.pipeline_mode<synchronous>, transform_indices = @transform_4, window_bounds = array<i64: 1, 128>}, {transform_indices = @transform_5, window_bounds = array<i64: 8, 128>}, {transform_indices = @transform_6, window_bounds = array<i64: 1, 1, 128>}, {transform_indices = @transform_7, window_bounds = array<i64: 1, 1, 128>}]} {
    %c0 = arith.constant 0 : index
    %c0_0 = arith.constant 0 : index
    %0 = vector.load %arg1[%c0, %c0_0] : memref<8x256xf32, #tpu.memory_space<vmem>>, vector<8x256xf32>
    %c0_1 = arith.constant 0 : index
    %c0_2 = arith.constant 0 : index
    %1 = vector.load %arg2[%c0_1, %c0_2] : memref<1x256xf32, #tpu.memory_space<vmem>>, vector<1x256xf32>
    %2 = vector.broadcast %1 : vector<1x256xf32> to vector<8x256xf32>
    %3 = arith.mulf %0, %2 : vector<8x256xf32>
    %c0_3 = arith.constant 0 : index
    %c0_4 = arith.constant 0 : index
    %4 = vector.load %arg3[%c0_3, %c0_4] : memref<1x256xf32, #tpu.memory_space<vmem>>, vector<1x256xf32>
    %5 = vector.broadcast %4 : vector<1x256xf32> to vector<8x256xf32>
    %6 = arith.addf %3, %5 : vector<8x256xf32>
    %cst = arith.constant 0.000000e+00 : f32
    %7 = vector.broadcast %cst : f32 to vector<8x256xf32>
    %8 = arith.maximumf %6, %7 : vector<8x256xf32>
    %9 = arith.truncf %8 : vector<8x256xf32> to vector<8x256xbf16>
    %c0_5 = arith.constant 0 : index
    %c0_6 = arith.constant 0 : index
    %10 = vector.load %arg4[%c0_5, %c0_6] : memref<256x128xbf16, #tpu.memory_space<vmem>>, vector<256x128xbf16>
    %cst_7 = arith.constant dense<0.000000e+00> : vector<8x128xf32>
    %11 = tpu.matmul %9, %10, %cst_7 {dimension_numbers = #tpu.dot_dimension_numbers<[1], [0], [0], [1], [0, 0, 1, 1], [], []>} : vector<8x256xbf16>, vector<256x128xbf16>, vector<8x128xf32> -> vector<8x128xf32>
    %c0_8 = arith.constant 0 : index
    %c0_9 = arith.constant 0 : index
    %12 = vector.load %arg5[%c0_8, %c0_9] : memref<1x128xf32, #tpu.memory_space<vmem>>, vector<1x128xf32>
    %13 = vector.broadcast %12 : vector<1x128xf32> to vector<8x128xf32>
    %14 = arith.addf %11, %13 : vector<8x128xf32>
    %c0_10 = arith.constant 0 : index
    %c0_11 = arith.constant 0 : index
    %15 = vector.load %arg6[%c0_10, %c0_11] : memref<8x128xf32, #tpu.memory_space<vmem>>, vector<8x128xf32>
    tpu.vector_store %arg6[%c0_10, %c0_11], %14 {strides = array<i32>} : memref<8x128xf32, #tpu.memory_space<vmem>>, vector<8x128xf32>,
    %16 = tpu.iota {dimensions = array<i32: 0>} : vector<8x1xi32>
    %c8_i32 = arith.constant 8 : i32
    %17 = arith.muli %arg0, %c8_i32 : i32
    %18 = vector.broadcast %17 : i32 to vector<8x1xi32>
    %19 = arith.addi %16, %18 : vector<8x1xi32>
    %c2_i32 = arith.constant 2 : i32
    %20 = vector.broadcast %c2_i32 : i32 to vector<8x1xi32>
    %21 = arith.cmpi slt, %19, %20 : vector<8x1xi32>
    %22 = arith.extui %21 : vector<8x1xi1> to vector<8x1xi32>
    %23 = arith.sitofp %22 : vector<8x1xi32> to vector<8x1xf32>
    %24 = vector.broadcast %23 : vector<8x1xf32> to vector<8x128xf32>
    %25 = arith.mulf %14, %24 : vector<8x128xf32>
    %cst_12 = arith.constant dense<0.000000e+00> : vector<128xf32>
    %26 = vector.multi_reduction <add>, %25, %cst_12 [0] : vector<8x128xf32> to vector<128xf32>
    %27 = vector.shape_cast %26 : vector<128xf32> to vector<1x128xf32>
    %c0_13 = arith.constant 0 : index
    %c0_14 = arith.constant 0 : index
    %c0_15 = arith.constant 0 : index
    %28 = vector.load %arg7[%c0_13, %c0_14, %c0_15] : memref<1x1x128xf32, #tpu.memory_space<vmem>>, vector<1x1x128xf32>
    %29 = vector.shape_cast %28 : vector<1x1x128xf32> to vector<1x128xf32>
    %30 = vector.shape_cast %27 : vector<1x128xf32> to vector<1x1x128xf32>
    tpu.vector_store %arg7[%c0_13, %c0_14, %c0_15], %30 {strides = array<i32>} : memref<1x1x128xf32, #tpu.memory_space<vmem>>, vector<1x1x128xf32>,
    %31 = arith.mulf %25, %14 : vector<8x128xf32>
    %cst_16 = arith.constant dense<0.000000e+00> : vector<128xf32>
    %32 = vector.multi_reduction <add>, %31, %cst_16 [0] : vector<8x128xf32> to vector<128xf32>
    %33 = vector.shape_cast %32 : vector<128xf32> to vector<1x128xf32>
    %c0_17 = arith.constant 0 : index
    %c0_18 = arith.constant 0 : index
    %c0_19 = arith.constant 0 : index
    %34 = vector.load %arg8[%c0_17, %c0_18, %c0_19] : memref<1x1x128xf32, #tpu.memory_space<vmem>>, vector<1x1x128xf32>
    %35 = vector.shape_cast %34 : vector<1x1x128xf32> to vector<1x128xf32>
    %36 = vector.shape_cast %33 : vector<1x128xf32> to vector<1x1x128xf32>
    tpu.vector_store %arg8[%c0_17, %c0_18, %c0_19], %36 {strides = array<i32>} : memref<1x1x128xf32, #tpu.memory_space<vmem>>, vector<1x1x128xf32>,
    return
  }
  func.func @transform_0(%arg0: i32) -> (i32, i32) {
    %c0_i32 = arith.constant 0 : i32
    %c0_i32_0 = arith.constant 0 : i32
    return %arg0, %c0_i32 : i32, i32
  }
  func.func @transform_1(%arg0: i32) -> (i32, i32) {
    %c0_i32 = arith.constant 0 : i32
    %c0_i32_0 = arith.constant 0 : i32
    %c0_i32_1 = arith.constant 0 : i32
    return %c0_i32, %c0_i32_0 : i32, i32
  }
  func.func @transform_2(%arg0: i32) -> (i32, i32) {
    %c0_i32 = arith.constant 0 : i32
    %c0_i32_0 = arith.constant 0 : i32
    %c0_i32_1 = arith.constant 0 : i32
    return %c0_i32, %c0_i32_0 : i32, i32
  }
  func.func @transform_3(%arg0: i32) -> (i32, i32) {
    %c0_i32 = arith.constant 0 : i32
    %c0_i32_0 = arith.constant 0 : i32
    %c0_i32_1 = arith.constant 0 : i32
    return %c0_i32, %c0_i32_0 : i32, i32
  }
  func.func @transform_4(%arg0: i32) -> (i32, i32) {
    %c0_i32 = arith.constant 0 : i32
    %c0_i32_0 = arith.constant 0 : i32
    %c0_i32_1 = arith.constant 0 : i32
    return %c0_i32, %c0_i32_0 : i32, i32
  }
  func.func @transform_5(%arg0: i32) -> (i32, i32) {
    %c0_i32 = arith.constant 0 : i32
    %c0_i32_0 = arith.constant 0 : i32
    return %arg0, %c0_i32 : i32, i32
  }
  func.func @transform_6(%arg0: i32) -> (i32, i32, i32) {
    %c0_i32 = arith.constant 0 : i32
    %c0_i32_0 = arith.constant 0 : i32
    %c0_i32_1 = arith.constant 0 : i32
    return %arg0, %c0_i32, %c0_i32_0 : i32, i32, i32
  }
  func.func @transform_7(%arg0: i32) -> (i32, i32, i32) {
    %c0_i32 = arith.constant 0 : i32
    %c0_i32_0 = arith.constant 0 : i32
    %c0_i32_1 = arith.constant 0 : i32
    return %arg0, %c0_i32, %c0_i32_0 : i32, i32, i32
  }
}

module attributes {stable_mosaic.version = 11 : i64} {
  func.func @_dec_kernel(%arg0: i32, %arg1: memref<8x128xf32, #tpu.memory_space<vmem>>, %arg2: memref<1x128xf32, #tpu.memory_space<vmem>>, %arg3: memref<1x128xf32, #tpu.memory_space<vmem>>, %arg4: memref<8x128xf32, #tpu.memory_space<vmem>>, %arg5: memref<128x256xbf16, #tpu.memory_space<vmem>>, %arg6: memref<1x256xf32, #tpu.memory_space<vmem>>, %arg7: memref<128x128xbf16, #tpu.memory_space<vmem>>, %arg8: memref<1x128xf32, #tpu.memory_space<vmem>>, %arg9: memref<128x256xbf16, #tpu.memory_space<vmem>>, %arg10: memref<1x256xf32, #tpu.memory_space<vmem>>, %arg11: memref<256x896xbf16, #tpu.memory_space<vmem>>, %arg12: memref<1x896xf32, #tpu.memory_space<vmem>>, %arg13: memref<8x896xf32, #tpu.memory_space<vmem>>, %arg14: memref<8x1xf32, #tpu.memory_space<vmem>>) attributes {dimension_semantics = [#tpu.dimension_semantics<parallel>], iteration_bounds = array<i64: 1>, scalar_prefetch = 0 : i64, scratch_operands = 0 : i64, tpu.core_type = #tpu.core_type<tc>, window_params = [{transform_indices = @transform_0, window_bounds = array<i64: 8, 128>}, {pipeline_mode = #tpu.pipeline_mode<synchronous>, transform_indices = @transform_1, window_bounds = array<i64: 1, 128>}, {pipeline_mode = #tpu.pipeline_mode<synchronous>, transform_indices = @transform_2, window_bounds = array<i64: 1, 128>}, {transform_indices = @transform_3, window_bounds = array<i64: 8, 128>}, {pipeline_mode = #tpu.pipeline_mode<synchronous>, transform_indices = @transform_4, window_bounds = array<i64: 128, 256>}, {pipeline_mode = #tpu.pipeline_mode<synchronous>, transform_indices = @transform_5, window_bounds = array<i64: 1, 256>}, {pipeline_mode = #tpu.pipeline_mode<synchronous>, transform_indices = @transform_6, window_bounds = array<i64: 128, 128>}, {pipeline_mode = #tpu.pipeline_mode<synchronous>, transform_indices = @transform_7, window_bounds = array<i64: 1, 128>}, {pipeline_mode = #tpu.pipeline_mode<synchronous>, transform_indices = @transform_8, window_bounds = array<i64: 128, 256>}, {pipeline_mode = #tpu.pipeline_mode<synchronous>, transform_indices = @transform_9, window_bounds = array<i64: 1, 256>}, {pipeline_mode = #tpu.pipeline_mode<synchronous>, transform_indices = @transform_10, window_bounds = array<i64: 256, 896>}, {pipeline_mode = #tpu.pipeline_mode<synchronous>, transform_indices = @transform_11, window_bounds = array<i64: 1, 896>}, {transform_indices = @transform_12, window_bounds = array<i64: 8, 896>}, {transform_indices = @transform_13, window_bounds = array<i64: 8, 1>}]} {
    %c0 = arith.constant 0 : index
    %c0_0 = arith.constant 0 : index
    %0 = vector.load %arg1[%c0, %c0_0] : memref<8x128xf32, #tpu.memory_space<vmem>>, vector<8x128xf32>
    %c0_1 = arith.constant 0 : index
    %c0_2 = arith.constant 0 : index
    %1 = vector.load %arg2[%c0_1, %c0_2] : memref<1x128xf32, #tpu.memory_space<vmem>>, vector<1x128xf32>
    %2 = vector.broadcast %1 : vector<1x128xf32> to vector<8x128xf32>
    %3 = arith.mulf %0, %2 : vector<8x128xf32>
    %c0_3 = arith.constant 0 : index
    %c0_4 = arith.constant 0 : index
    %4 = vector.load %arg3[%c0_3, %c0_4] : memref<1x128xf32, #tpu.memory_space<vmem>>, vector<1x128xf32>
    %5 = vector.broadcast %4 : vector<1x128xf32> to vector<8x128xf32>
    %6 = arith.addf %3, %5 : vector<8x128xf32>
    %cst = arith.constant 0.000000e+00 : f32
    %7 = vector.broadcast %cst : f32 to vector<8x128xf32>
    %8 = arith.maximumf %6, %7 : vector<8x128xf32>
    %9 = arith.truncf %8 : vector<8x128xf32> to vector<8x128xbf16>
    %c0_5 = arith.constant 0 : index
    %c0_6 = arith.constant 0 : index
    %10 = vector.load %arg5[%c0_5, %c0_6] : memref<128x256xbf16, #tpu.memory_space<vmem>>, vector<128x256xbf16>
    %cst_7 = arith.constant dense<0.000000e+00> : vector<8x256xf32>
    %11 = tpu.matmul %9, %10, %cst_7 {dimension_numbers = #tpu.dot_dimension_numbers<[1], [0], [0], [1], [0, 0, 1, 1], [], []>} : vector<8x128xbf16>, vector<128x256xbf16>, vector<8x256xf32> -> vector<8x256xf32>
    %c0_8 = arith.constant 0 : index
    %c0_9 = arith.constant 0 : index
    %12 = vector.load %arg6[%c0_8, %c0_9] : memref<1x256xf32, #tpu.memory_space<vmem>>, vector<1x256xf32>
    %13 = vector.broadcast %12 : vector<1x256xf32> to vector<8x256xf32>
    %14 = arith.addf %11, %13 : vector<8x256xf32>
    %15 = vector.extract_strided_slice %14 {offsets = [0, 0], sizes = [8, 128], strides = [1, 1]} : vector<8x256xf32> to vector<8x128xf32>
    %16 = vector.extract_strided_slice %14 {offsets = [0, 128], sizes = [8, 128], strides = [1, 1]} : vector<8x256xf32> to vector<8x128xf32>
    %cst_10 = arith.constant 5.000000e-01 : f32
    %17 = vector.broadcast %cst_10 : f32 to vector<8x128xf32>
    %18 = arith.mulf %17, %16 : vector<8x128xf32>
    %19 = math.exp %18 : vector<8x128xf32>
    %c0_11 = arith.constant 0 : index
    %c0_12 = arith.constant 0 : index
    %20 = vector.load %arg4[%c0_11, %c0_12] : memref<8x128xf32, #tpu.memory_space<vmem>>, vector<8x128xf32>
    %21 = arith.mulf %20, %19 : vector<8x128xf32>
    %22 = arith.addf %21, %15 : vector<8x128xf32>
    %23 = arith.truncf %22 : vector<8x128xf32> to vector<8x128xbf16>
    %c0_13 = arith.constant 0 : index
    %c0_14 = arith.constant 0 : index
    %24 = vector.load %arg7[%c0_13, %c0_14] : memref<128x128xbf16, #tpu.memory_space<vmem>>, vector<128x128xbf16>
    %cst_15 = arith.constant dense<0.000000e+00> : vector<8x128xf32>
    %25 = tpu.matmul %23, %24, %cst_15 {dimension_numbers = #tpu.dot_dimension_numbers<[1], [0], [0], [1], [0, 0, 1, 1], [], []>} : vector<8x128xbf16>, vector<128x128xbf16>, vector<8x128xf32> -> vector<8x128xf32>
    %c0_16 = arith.constant 0 : index
    %c0_17 = arith.constant 0 : index
    %26 = vector.load %arg8[%c0_16, %c0_17] : memref<1x128xf32, #tpu.memory_space<vmem>>, vector<1x128xf32>
    %27 = vector.broadcast %26 : vector<1x128xf32> to vector<8x128xf32>
    %28 = arith.addf %25, %27 : vector<8x128xf32>
    %cst_18 = arith.constant 0.000000e+00 : f32
    %29 = vector.broadcast %cst_18 : f32 to vector<8x128xf32>
    %30 = arith.maximumf %28, %29 : vector<8x128xf32>
    %31 = arith.truncf %30 : vector<8x128xf32> to vector<8x128xbf16>
    %c0_19 = arith.constant 0 : index
    %c0_20 = arith.constant 0 : index
    %32 = vector.load %arg9[%c0_19, %c0_20] : memref<128x256xbf16, #tpu.memory_space<vmem>>, vector<128x256xbf16>
    %cst_21 = arith.constant dense<0.000000e+00> : vector<8x256xf32>
    %33 = tpu.matmul %31, %32, %cst_21 {dimension_numbers = #tpu.dot_dimension_numbers<[1], [0], [0], [1], [0, 0, 1, 1], [], []>} : vector<8x128xbf16>, vector<128x256xbf16>, vector<8x256xf32> -> vector<8x256xf32>
    %c0_22 = arith.constant 0 : index
    %c0_23 = arith.constant 0 : index
    %34 = vector.load %arg10[%c0_22, %c0_23] : memref<1x256xf32, #tpu.memory_space<vmem>>, vector<1x256xf32>
    %35 = vector.broadcast %34 : vector<1x256xf32> to vector<8x256xf32>
    %36 = arith.addf %33, %35 : vector<8x256xf32>
    %cst_24 = arith.constant 0.000000e+00 : f32
    %37 = vector.broadcast %cst_24 : f32 to vector<8x256xf32>
    %38 = arith.maximumf %36, %37 : vector<8x256xf32>
    %39 = arith.truncf %38 : vector<8x256xf32> to vector<8x256xbf16>
    %c0_25 = arith.constant 0 : index
    %c0_26 = arith.constant 0 : index
    %40 = vector.load %arg11[%c0_25, %c0_26] : memref<256x896xbf16, #tpu.memory_space<vmem>>, vector<256x896xbf16>
    %cst_27 = arith.constant dense<0.000000e+00> : vector<8x896xf32>
    %41 = tpu.matmul %39, %40, %cst_27 {dimension_numbers = #tpu.dot_dimension_numbers<[1], [0], [0], [1], [0, 0, 1, 1], [], []>} : vector<8x256xbf16>, vector<256x896xbf16>, vector<8x896xf32> -> vector<8x896xf32>
    %c0_28 = arith.constant 0 : index
    %c0_29 = arith.constant 0 : index
    %42 = vector.load %arg12[%c0_28, %c0_29] : memref<1x896xf32, #tpu.memory_space<vmem>>, vector<1x896xf32>
    %43 = vector.broadcast %42 : vector<1x896xf32> to vector<8x896xf32>
    %44 = arith.addf %41, %43 : vector<8x896xf32>
    %cst_30 = arith.constant 0.000000e+00 : f32
    %45 = vector.broadcast %cst_30 : f32 to vector<8x896xf32>
    %46 = arith.subf %45, %44 : vector<8x896xf32>
    %47 = math.exp %46 : vector<8x896xf32>
    %cst_31 = arith.constant 1.000000e+00 : f32
    %48 = vector.broadcast %cst_31 : f32 to vector<8x896xf32>
    %49 = arith.addf %48, %47 : vector<8x896xf32>
    %50 = tpu.reciprocal %49 {approx = true} : vector<8x896xf32> -> vector<8x896xf32>
    %c0_32 = arith.constant 0 : index
    %c0_33 = arith.constant 0 : index
    %51 = vector.load %arg13[%c0_32, %c0_33] : memref<8x896xf32, #tpu.memory_space<vmem>>, vector<8x896xf32>
    tpu.vector_store %arg13[%c0_32, %c0_33], %50 {strides = array<i32>} : memref<8x896xf32, #tpu.memory_space<vmem>>, vector<8x896xf32>,
    %cst_34 = arith.constant 1.000000e+00 : f32
    %52 = vector.broadcast %cst_34 : f32 to vector<8x128xf32>
    %53 = arith.addf %52, %16 : vector<8x128xf32>
    %54 = arith.mulf %15, %15 : vector<8x128xf32>
    %55 = arith.subf %53, %54 : vector<8x128xf32>
    %56 = arith.mulf %19, %19 : vector<8x128xf32>
    %57 = arith.subf %55, %56 : vector<8x128xf32>
    %cst_35 = arith.constant dense<0.000000e+00> : vector<8xf32>
    %58 = vector.multi_reduction <add>, %57, %cst_35 [1] : vector<8x128xf32> to vector<8xf32>
    %59 = vector.shape_cast %58 : vector<8xf32> to vector<8x1xf32>
    %cst_36 = arith.constant -5.000000e-01 : f32
    %60 = vector.broadcast %cst_36 : f32 to vector<8x1xf32>
    %61 = arith.mulf %60, %59 : vector<8x1xf32>
    %c0_37 = arith.constant 0 : index
    %c0_38 = arith.constant 0 : index
    %62 = vector.load %arg14[%c0_37, %c0_38] : memref<8x1xf32, #tpu.memory_space<vmem>>, vector<8x1xf32>
    tpu.vector_store %arg14[%c0_37, %c0_38], %61 {strides = array<i32>} : memref<8x1xf32, #tpu.memory_space<vmem>>, vector<8x1xf32>,
    return
  }
  func.func @transform_0(%arg0: i32) -> (i32, i32) {
    %c0_i32 = arith.constant 0 : i32
    %c0_i32_0 = arith.constant 0 : i32
    return %arg0, %c0_i32 : i32, i32
  }
  func.func @transform_1(%arg0: i32) -> (i32, i32) {
    %c0_i32 = arith.constant 0 : i32
    %c0_i32_0 = arith.constant 0 : i32
    %c0_i32_1 = arith.constant 0 : i32
    return %c0_i32, %c0_i32_0 : i32, i32
  }
  func.func @transform_2(%arg0: i32) -> (i32, i32) {
    %c0_i32 = arith.constant 0 : i32
    %c0_i32_0 = arith.constant 0 : i32
    %c0_i32_1 = arith.constant 0 : i32
    return %c0_i32, %c0_i32_0 : i32, i32
  }
  func.func @transform_3(%arg0: i32) -> (i32, i32) {
    %c0_i32 = arith.constant 0 : i32
    %c0_i32_0 = arith.constant 0 : i32
    return %arg0, %c0_i32 : i32, i32
  }
  func.func @transform_4(%arg0: i32) -> (i32, i32) {
    %c0_i32 = arith.constant 0 : i32
    %c0_i32_0 = arith.constant 0 : i32
    %c0_i32_1 = arith.constant 0 : i32
    return %c0_i32, %c0_i32_0 : i32, i32
  }
  func.func @transform_5(%arg0: i32) -> (i32, i32) {
    %c0_i32 = arith.constant 0 : i32
    %c0_i32_0 = arith.constant 0 : i32
    %c0_i32_1 = arith.constant 0 : i32
    return %c0_i32, %c0_i32_0 : i32, i32
  }
  func.func @transform_6(%arg0: i32) -> (i32, i32) {
    %c0_i32 = arith.constant 0 : i32
    %c0_i32_0 = arith.constant 0 : i32
    %c0_i32_1 = arith.constant 0 : i32
    return %c0_i32, %c0_i32_0 : i32, i32
  }
  func.func @transform_7(%arg0: i32) -> (i32, i32) {
    %c0_i32 = arith.constant 0 : i32
    %c0_i32_0 = arith.constant 0 : i32
    %c0_i32_1 = arith.constant 0 : i32
    return %c0_i32, %c0_i32_0 : i32, i32
  }
  func.func @transform_8(%arg0: i32) -> (i32, i32) {
    %c0_i32 = arith.constant 0 : i32
    %c0_i32_0 = arith.constant 0 : i32
    %c0_i32_1 = arith.constant 0 : i32
    return %c0_i32, %c0_i32_0 : i32, i32
  }
  func.func @transform_9(%arg0: i32) -> (i32, i32) {
    %c0_i32 = arith.constant 0 : i32
    %c0_i32_0 = arith.constant 0 : i32
    %c0_i32_1 = arith.constant 0 : i32
    return %c0_i32, %c0_i32_0 : i32, i32
  }
  func.func @transform_10(%arg0: i32) -> (i32, i32) {
    %c0_i32 = arith.constant 0 : i32
    %c0_i32_0 = arith.constant 0 : i32
    %c0_i32_1 = arith.constant 0 : i32
    return %c0_i32, %c0_i32_0 : i32, i32
  }
  func.func @transform_11(%arg0: i32) -> (i32, i32) {
    %c0_i32 = arith.constant 0 : i32
    %c0_i32_0 = arith.constant 0 : i32
    %c0_i32_1 = arith.constant 0 : i32
    return %c0_i32, %c0_i32_0 : i32, i32
  }
  func.func @transform_12(%arg0: i32) -> (i32, i32) {
    %c0_i32 = arith.constant 0 : i32
    %c0_i32_0 = arith.constant 0 : i32
    return %arg0, %c0_i32 : i32, i32
  }
  func.func @transform_13(%arg0: i32) -> (i32, i32) {
    %c0_i32 = arith.constant 0 : i32
    %c0_i32_0 = arith.constant 0 : i32
    return %arg0, %c0_i32 : i32, i32
  }
}

module attributes {stable_mosaic.version = 11 : i64} {
  func.func @_enc1_kernel(%arg0: i32, %arg1: memref<8x896xbf16, #tpu.memory_space<vmem>>, %arg2: memref<896x256xbf16, #tpu.memory_space<vmem>>, %arg3: memref<1x256xf32, #tpu.memory_space<vmem>>, %arg4: memref<8x256xf32, #tpu.memory_space<vmem>>, %arg5: memref<1x1x256xf32, #tpu.memory_space<vmem>>, %arg6: memref<1x1x256xf32, #tpu.memory_space<vmem>>) attributes {dimension_semantics = [#tpu.dimension_semantics<parallel>], iteration_bounds = array<i64: 1>, scalar_prefetch = 0 : i64, scratch_operands = 0 : i64, tpu.core_type = #tpu.core_type<tc>, window_params = [{transform_indices = @transform_0, window_bounds = array<i64: 8, 896>}, {pipeline_mode = #tpu.pipeline_mode<synchronous>, transform_indices = @transform_1, window_bounds = array<i64: 896, 256>}, {pipeline_mode = #tpu.pipeline_mode<synchronous>, transform_indices = @transform_2, window_bounds = array<i64: 1, 256>}, {transform_indices = @transform_3, window_bounds = array<i64: 8, 256>}, {transform_indices = @transform_4, window_bounds = array<i64: 1, 1, 256>}, {transform_indices = @transform_5, window_bounds = array<i64: 1, 1, 256>}]} {
    %c0 = arith.constant 0 : index
    %c0_0 = arith.constant 0 : index
    %0 = vector.load %arg1[%c0, %c0_0] : memref<8x896xbf16, #tpu.memory_space<vmem>>, vector<8x896xbf16>
    %c0_1 = arith.constant 0 : index
    %c0_2 = arith.constant 0 : index
    %1 = vector.load %arg2[%c0_1, %c0_2] : memref<896x256xbf16, #tpu.memory_space<vmem>>, vector<896x256xbf16>
    %cst = arith.constant dense<0.000000e+00> : vector<8x256xf32>
    %2 = tpu.matmul %0, %1, %cst {dimension_numbers = #tpu.dot_dimension_numbers<[1], [0], [0], [1], [0, 0, 1, 1], [], []>} : vector<8x896xbf16>, vector<896x256xbf16>, vector<8x256xf32> -> vector<8x256xf32>
    %c0_3 = arith.constant 0 : index
    %c0_4 = arith.constant 0 : index
    %3 = vector.load %arg3[%c0_3, %c0_4] : memref<1x256xf32, #tpu.memory_space<vmem>>, vector<1x256xf32>
    %4 = vector.broadcast %3 : vector<1x256xf32> to vector<8x256xf32>
    %5 = arith.addf %2, %4 : vector<8x256xf32>
    %c0_5 = arith.constant 0 : index
    %c0_6 = arith.constant 0 : index
    %6 = vector.load %arg4[%c0_5, %c0_6] : memref<8x256xf32, #tpu.memory_space<vmem>>, vector<8x256xf32>
    tpu.vector_store %arg4[%c0_5, %c0_6], %5 {strides = array<i32>} : memref<8x256xf32, #tpu.memory_space<vmem>>, vector<8x256xf32>,
    %7 = tpu.iota {dimensions = array<i32: 0>} : vector<8x1xi32>
    %c8_i32 = arith.constant 8 : i32
    %8 = arith.muli %arg0, %c8_i32 : i32
    %9 = vector.broadcast %8 : i32 to vector<8x1xi32>
    %10 = arith.addi %7, %9 : vector<8x1xi32>
    %c2_i32 = arith.constant 2 : i32
    %11 = vector.broadcast %c2_i32 : i32 to vector<8x1xi32>
    %12 = arith.cmpi slt, %10, %11 : vector<8x1xi32>
    %13 = arith.extui %12 : vector<8x1xi1> to vector<8x1xi32>
    %14 = arith.sitofp %13 : vector<8x1xi32> to vector<8x1xf32>
    %15 = vector.broadcast %14 : vector<8x1xf32> to vector<8x256xf32>
    %16 = arith.mulf %5, %15 : vector<8x256xf32>
    %cst_7 = arith.constant dense<0.000000e+00> : vector<256xf32>
    %17 = vector.multi_reduction <add>, %16, %cst_7 [0] : vector<8x256xf32> to vector<256xf32>
    %18 = vector.shape_cast %17 : vector<256xf32> to vector<1x256xf32>
    %c0_8 = arith.constant 0 : index
    %c0_9 = arith.constant 0 : index
    %c0_10 = arith.constant 0 : index
    %19 = vector.load %arg5[%c0_8, %c0_9, %c0_10] : memref<1x1x256xf32, #tpu.memory_space<vmem>>, vector<1x1x256xf32>
    %20 = vector.shape_cast %19 : vector<1x1x256xf32> to vector<1x256xf32>
    %21 = vector.shape_cast %18 : vector<1x256xf32> to vector<1x1x256xf32>
    tpu.vector_store %arg5[%c0_8, %c0_9, %c0_10], %21 {strides = array<i32>} : memref<1x1x256xf32, #tpu.memory_space<vmem>>, vector<1x1x256xf32>,
    %22 = arith.mulf %16, %5 : vector<8x256xf32>
    %cst_11 = arith.constant dense<0.000000e+00> : vector<256xf32>
    %23 = vector.multi_reduction <add>, %22, %cst_11 [0] : vector<8x256xf32> to vector<256xf32>
    %24 = vector.shape_cast %23 : vector<256xf32> to vector<1x256xf32>
    %c0_12 = arith.constant 0 : index
    %c0_13 = arith.constant 0 : index
    %c0_14 = arith.constant 0 : index
    %25 = vector.load %arg6[%c0_12, %c0_13, %c0_14] : memref<1x1x256xf32, #tpu.memory_space<vmem>>, vector<1x1x256xf32>
    %26 = vector.shape_cast %25 : vector<1x1x256xf32> to vector<1x256xf32>
    %27 = vector.shape_cast %24 : vector<1x256xf32> to vector<1x1x256xf32>
    tpu.vector_store %arg6[%c0_12, %c0_13, %c0_14], %27 {strides = array<i32>} : memref<1x1x256xf32, #tpu.memory_space<vmem>>, vector<1x1x256xf32>,
    return
  }
  func.func @transform_0(%arg0: i32) -> (i32, i32) {
    %c0_i32 = arith.constant 0 : i32
    %c0_i32_0 = arith.constant 0 : i32
    return %arg0, %c0_i32 : i32, i32
  }
  func.func @transform_1(%arg0: i32) -> (i32, i32) {
    %c0_i32 = arith.constant 0 : i32
    %c0_i32_0 = arith.constant 0 : i32
    %c0_i32_1 = arith.constant 0 : i32
    return %c0_i32, %c0_i32_0 : i32, i32
  }
  func.func @transform_2(%arg0: i32) -> (i32, i32) {
    %c0_i32 = arith.constant 0 : i32
    %c0_i32_0 = arith.constant 0 : i32
    %c0_i32_1 = arith.constant 0 : i32
    return %c0_i32, %c0_i32_0 : i32, i32
  }
  func.func @transform_3(%arg0: i32) -> (i32, i32) {
    %c0_i32 = arith.constant 0 : i32
    %c0_i32_0 = arith.constant 0 : i32
    return %arg0, %c0_i32 : i32, i32
  }
  func.func @transform_4(%arg0: i32) -> (i32, i32, i32) {
    %c0_i32 = arith.constant 0 : i32
    %c0_i32_0 = arith.constant 0 : i32
    %c0_i32_1 = arith.constant 0 : i32
    return %arg0, %c0_i32, %c0_i32_0 : i32, i32, i32
  }
  func.func @transform_5(%arg0: i32) -> (i32, i32, i32) {
    %c0_i32 = arith.constant 0 : i32
    %c0_i32_0 = arith.constant 0 : i32
    %c0_i32_1 = arith.constant 0 : i32
    return %arg0, %c0_i32, %c0_i32_0 : i32, i32, i32
  }
}

</mosaic_0001>

<llo_original>
// kernel: mnist_vae_forward.4
$region0: #{mnist_vae_forward.4}
  #allocation0 [shape = 'u32[]', space=smem, size = 0x4, offset = 0x4, fixed_abs, tag = 'smem constant byte address 0x4 - core index']
  #allocation1 [shape = 'u32[144,128]{1,0:T(1,128)}', space=vmem, size = 0x12000, scoped, tag = 'internal scratch']
  %s0 = inlined_call_operand.vmem [shape: f32[8,256], index: 0, kind: input, shape index: {}]
  %s1 = inlined_call_operand.vmem [shape: f32[1,256], index: 1, kind: input, shape index: {}]
  %s2 = inlined_call_operand.vmem [shape: f32[1,256], index: 2, kind: input, shape index: {}]
  %s3 = inlined_call_operand.vmem [shape: bf16[256,128], index: 3, kind: input, shape index: {}]
  %s4 = inlined_call_operand.vmem [shape: f32[1,128], index: 4, kind: input, shape index: {}]
  %s5 = inlined_call_operand.vmem [shape: f32[8,128], index: 5, kind: output, shape index: {0}]
  %s6 = inlined_call_operand.vmem [shape: f32[1,1,128], index: 6, kind: output, shape index: {1}]
  %s7 = inlined_call_operand.vmem [shape: f32[1,1,128], index: 7, kind: output, shape index: {2}]
  %8 = xla_tuple %s5, %s6, %s7
  %s9 = sld [smem:[#allocation0]]
  $region46: #{mnist_vae_forward.4} parent=0
    _
  %s11 = ssub.s32 1, %s9
  %s12 = scalar_select 0, %s11, %s9
  // Predicated region
  $region2: #{mnist_vae_forward.4} parent=0 // pred_check
    _
  $region3: #{mnist_vae_forward.4} parent=0 // pred_check_branch
    %14 = sbr.rel (0) target = $region5
  $region4: #{mnist_vae_forward.4} parent=0 // pred_region
    _
  $region5: #{mnist_vae_forward.4} parent=0 // pred_fallthru
    _
  // Predicated region
  $region6: #{mnist_vae_forward.4} parent=0 // pred_check
    _
  $region7: #{mnist_vae_forward.4} parent=0 // pred_check_branch
    %16 = sbr.rel (0) target = $region9
  $region8: #{mnist_vae_forward.4} parent=0 // pred_region
    _
  $region9: #{mnist_vae_forward.4} parent=0 // pred_fallthru
    _
  // Predicated region
  $region10: #{mnist_vae_forward.4} parent=0 // pred_check
    _
  $region11: #{mnist_vae_forward.4} parent=0 // pred_check_branch
    %18 = sbr.rel (0) target = $region13
  $region12: #{mnist_vae_forward.4} parent=0 // pred_region
    _
  $region13: #{mnist_vae_forward.4} parent=0 // pred_fallthru
    _
  // Predicated region
  $region14: #{mnist_vae_forward.4} parent=0 // pred_check
    _
  $region15: #{mnist_vae_forward.4} parent=0 // pred_check_branch
    %20 = sbr.rel (0) target = $region17
  $region16: #{mnist_vae_forward.4} parent=0 // pred_region
    _
  $region17: #{mnist_vae_forward.4} parent=0 // pred_fallthru
    _
  // Predicated region
  $region18: #{mnist_vae_forward.4} parent=0 // pred_check
    _
  $region19: #{mnist_vae_forward.4} parent=0 // pred_check_branch
    %22 = sbr.rel (0) target = $region21
  $region20: #{mnist_vae_forward.4} parent=0 // pred_region
    _
  $region21: #{mnist_vae_forward.4} parent=0 // pred_fallthru
    _
  %v24 = vld [vmem:[%s0] sm:$0xff]
  %v25 = vld [vmem:[%s0 + $0x8] sm:$0xff]
  %v26 = vld [vmem:[%s1] sm:$0x3]
  %v28 = vlaneseq
  %v29 = vshrl.u32 %v28, 7
  %v30 = vsub.s32 0, %v29
  %v31 = vrot.slane %v26, %v30
  %v32 = vlaneseq
  %v33 = vshrl.u32 %v32, 7
  %v34 = vsub.s32 1, %v33
  %v35 = vrot.slane %v26, %v34
  %v38 = vmul.f32 %v24, %v31
  %v39 = vmul.f32 %v25, %v35
  %v40 = vld [vmem:[%s2] sm:$0x3]
  %v42 = vlaneseq
  %v43 = vshrl.u32 %v42, 7
  %v44 = vsub.s32 0, %v43
  %v45 = vrot.slane %v40, %v44
  %v46 = vlaneseq
  %v47 = vshrl.u32 %v46, 7
  %v48 = vsub.s32 1, %v47
  %v49 = vrot.slane %v40, %v48
  %v52 = vadd.f32 %v38, %v45
  %v53 = vadd.f32 %v39, %v49
  %v54 = vmax.f32 %v52, 0.0
  %v55 = vmax.f32 %v53, 0.0
  %v56 = vpack.c.bf16 %v54, %v54
  %v57 = vpack.c.bf16 %v55, %v55
  %v58 = vld [vmem:[%s3] sm:$0xf]
  %v59 = vld [vmem:[%s3 + $0x4] sm:$0xf]
  %v60 = vld [vmem:[%s3 + $0x8] sm:$0xf]
  %v61 = vld [vmem:[%s3 + $0xc] sm:$0xf]
  %v62 = vld [vmem:[%s3 + $0x10] sm:$0xf]
  %v63 = vld [vmem:[%s3 + $0x14] sm:$0xf]
  %v64 = vld [vmem:[%s3 + $0x18] sm:$0xf]
  %v65 = vld [vmem:[%s3 + $0x1c] sm:$0xf]
  %v66 = vld [vmem:[%s3 + $0x20] sm:$0xf]
  %v67 = vld [vmem:[%s3 + $0x24] sm:$0xf]
  %v68 = vld [vmem:[%s3 + $0x28] sm:$0xf]
  %v69 = vld [vmem:[%s3 + $0x2c] sm:$0xf]
  %v70 = vld [vmem:[%s3 + $0x30] sm:$0xf]
  %v71 = vld [vmem:[%s3 + $0x34] sm:$0xf]
  %v72 = vld [vmem:[%s3 + $0x38] sm:$0xf]
  %v73 = vld [vmem:[%s3 + $0x3c] sm:$0xf]
  %v74 = vld [vmem:[%s3 + $0x40] sm:$0xf]
  %v75 = vld [vmem:[%s3 + $0x44] sm:$0xf]
  %v76 = vld [vmem:[%s3 + $0x48] sm:$0xf]
  %v77 = vld [vmem:[%s3 + $0x4c] sm:$0xf]
  %v78 = vld [vmem:[%s3 + $0x50] sm:$0xf]
  %v79 = vld [vmem:[%s3 + $0x54] sm:$0xf]
  %v80 = vld [vmem:[%s3 + $0x58] sm:$0xf]
  %v81 = vld [vmem:[%s3 + $0x5c] sm:$0xf]
  %v82 = vld [vmem:[%s3 + $0x60] sm:$0xf]
  %v83 = vld [vmem:[%s3 + $0x64] sm:$0xf]
  %v84 = vld [vmem:[%s3 + $0x68] sm:$0xf]
  %v85 = vld [vmem:[%s3 + $0x6c] sm:$0xf]
  %v86 = vld [vmem:[%s3 + $0x70] sm:$0xf]
  %v87 = vld [vmem:[%s3 + $0x74] sm:$0xf]
  %v88 = vld [vmem:[%s3 + $0x78] sm:$0xf]
  %v89 = vld [vmem:[%s3 + $0x7c] sm:$0xf]
  %v90 = vld [vmem:[%s4] sm:$0x1]
  %v92 = vlaneseq
  %v93 = vshrl.u32 %v92, 7
  %v94 = vsub.s32 0, %v93
  %v95 = vrot.slane %v90, %v94
  %v129 = vunpack.c.l.b16 %v58
  %v130 = vunpack.c.l.b16 %v59
  %v131 = vunpack.c.l.b16 %v60
  %v132 = vunpack.c.l.b16 %v61
  %v133 = vunpack.c.l.b16 %v62
  %v134 = vunpack.c.l.b16 %v63
  %v135 = vunpack.c.l.b16 %v64
  %v136 = vunpack.c.l.b16 %v65
  %v137 = vunpack.c.l.b16 %v66
  %v138 = vunpack.c.l.b16 %v67
  %v139 = vunpack.c.l.b16 %v68
  %v140 = vunpack.c.l.b16 %v69
  %v141 = vunpack.c.l.b16 %v70
  %v142 = vunpack.c.l.b16 %v71
  %v143 = vunpack.c.l.b16 %v72
  %v144 = vunpack.c.l.b16 %v73
  %v145 = vunpack.c.l.b16 %v74
  %v146 = vunpack.c.l.b16 %v75
  %v147 = vunpack.c.l.b16 %v76
  %v148 = vunpack.c.l.b16 %v77
  %v149 = vunpack.c.l.b16 %v78
  %v150 = vunpack.c.l.b16 %v79
  %v151 = vunpack.c.l.b16 %v80
  %v152 = vunpack.c.l.b16 %v81
  %v153 = vunpack.c.l.b16 %v82
  %v154 = vunpack.c.l.b16 %v83
  %v155 = vunpack.c.l.b16 %v84
  %v156 = vunpack.c.l.b16 %v85
  %v157 = vunpack.c.l.b16 %v86
  %v158 = vunpack.c.l.b16 %v87
  %v159 = vunpack.c.l.b16 %v88
  %v160 = vunpack.c.l.b16 %v89
  %v161 = vpack.c.b16 %v130, %v129
  %v162 = vpack.c.b16 %v132, %v131
  %v163 = vpack.c.b16 %v134, %v133
  %v164 = vpack.c.b16 %v136, %v135
  %v165 = vpack.c.b16 %v138, %v137
  %v166 = vpack.c.b16 %v140, %v139
  %v167 = vpack.c.b16 %v142, %v141
  %v168 = vpack.c.b16 %v144, %v143
  %v169 = vpack.c.b16 %v146, %v145
  %v170 = vpack.c.b16 %v148, %v147
  %v171 = vpack.c.b16 %v150, %v149
  %v172 = vpack.c.b16 %v152, %v151
  %v173 = vpack.c.b16 %v154, %v153
  %v174 = vpack.c.b16 %v156, %v155
  %v175 = vpack.c.b16 %v158, %v157
  %v176 = vpack.c.b16 %v160, %v159
  %193 = vmatprep.subr.bf16.mxu0 0
  %194 = vmatpush1.bf16.msra.mxu0 %v168
  %195 = vmatprep.subr.bf16.mxu0 0
  %196 = vmatpush1.bf16.msra.mxu0 %v167
  %197 = vmatprep.subr.bf16.mxu0 0
  %198 = vmatpush1.bf16.msra.mxu0 %v166
  %199 = vmatprep.subr.bf16.mxu0 0
  %200 = vmatpush1.bf16.msra.mxu0 %v165
  %201 = vmatprep.subr.bf16.mxu0 0
  %202 = vmatpush1.bf16.msra.mxu0 %v164
  %203 = vmatprep.subr.bf16.mxu0 0
  %204 = vmatpush1.bf16.msra.mxu0 %v163
  %205 = vmatprep.subr.bf16.mxu0 0
  %206 = vmatpush1.bf16.msra.mxu0 %v162
  %207 = vmatprep.subr.bf16.mxu0 0
  %208 = vmatpush1.bf16.msra.mxu0 %v161
  %209 = vmatprep.subr.bf16.mxu0 0
  %210 = vmatpush2.bf16.msra.mxu0 %v176
  %211 = vmatprep.subr.bf16.mxu0 0
  %212 = vmatpush2.bf16.msra.mxu0 %v175
  %213 = vmatprep.subr.bf16.mxu0 0
  %214 = vmatpush2.bf16.msra.mxu0 %v174
  %215 = vmatprep.subr.bf16.mxu0 0
  %216 = vmatpush2.bf16.msra.mxu0 %v173
  %217 = vmatprep.subr.bf16.mxu0 0
  %218 = vmatpush2.bf16.msra.mxu0 %v172
  %219 = vmatprep.subr.bf16.mxu0 0
  %220 = vmatpush2.bf16.msra.mxu0 %v171
  %221 = vmatprep.subr.bf16.mxu0 0
  %222 = vmatpush2.bf16.msra.mxu0 %v170
  %223 = vmatprep.subr.bf16.mxu0 0
  %224 = vmatpush2.bf16.msra.mxu0 %v169
  %225 = vmatprep.mubr.bf16.mxu0 %v57
  %226 = vmatmul.mubr.bf16.gmra.mxu0 %v56
  %v227 = vpop.f32.mrf.mxu0
  %v228 = vadd.f32 %v95, %v227
  %v229 = vpop.f32.mrf.mxu0
  %v230 = vpop.f32.mrf.mxu0
  %v231 = vpop.f32.mrf.mxu0
  %232 = vdwg.mxu0
  %233 = vst [vmem:[%s5] sm:$0xff] %v228
  %v234 = vlaneseq
  %v235 = vshrl.u32 %v234, 7
  %s236 = smul.u32 0, 8
  %v237 = vstv %s236
  %v238 = vadd.s32 %v235, %v237
  %vm239 = vcmp.lt.s32.totalorder %v238, 2
  %v240 = vsel %vm239, 1, 0
  %v241 = vcvt.s32.f32 %v240
  %v242 = vmul.f32 %v228, %v241
  %v243 = vrot.slane %v242, 4
  %v244 = vadd.f32 %v242, %v243
  %v245 = vrot.slane %v244, 2
  %v246 = vadd.f32 %v244, %v245
  %v247 = vrot.slane %v246, 1
  %v248 = vadd.f32 %v246, %v247
  %249 = vst [vmem:[%s6] sm:$0x1] %v248
  %v250 = vmul.f32 %v242, %v228
  %v251 = vrot.slane %v250, 4
  %v252 = vadd.f32 %v250, %v251
  %v253 = vrot.slane %v252, 2
  %v254 = vadd.f32 %v252, %v253
  %v255 = vrot.slane %v254, 1
  %v256 = vadd.f32 %v254, %v255
  %257 = vst [vmem:[%s7] sm:$0x1] %v256
  // Predicated region
  $region22: #{mnist_vae_forward.4} parent=0 // pred_check
    _
  $region23: #{mnist_vae_forward.4} parent=0 // pred_check_branch
    %259 = sbr.rel (0) target = $region25
  $region24: #{mnist_vae_forward.4} parent=0 // pred_region
    _
  $region25: #{mnist_vae_forward.4} parent=0 // pred_fallthru
    _
  // Predicated region
  $region26: #{mnist_vae_forward.4} parent=0 // pred_check
    _
  $region27: #{mnist_vae_forward.4} parent=0 // pred_check_branch
    %261 = sbr.rel (0) target = $region29
  $region28: #{mnist_vae_forward.4} parent=0 // pred_region
    _
  $region29: #{mnist_vae_forward.4} parent=0 // pred_fallthru
    _
  // Predicated region
  $region30: #{mnist_vae_forward.4} parent=0 // pred_check
    _
  $region31: #{mnist_vae_forward.4} parent=0 // pred_check_branch
    %263 = sbr.rel (0) target = $region33
  $region32: #{mnist_vae_forward.4} parent=0 // pred_region
    _
  $region33: #{mnist_vae_forward.4} parent=0 // pred_fallthru
    _
  // Predicated region
  $region34: #{mnist_vae_forward.4} parent=0 // pred_check
    _
  $region35: #{mnist_vae_forward.4} parent=0 // pred_check_branch
    %265 = sbr.rel (0) target = $region37
  $region36: #{mnist_vae_forward.4} parent=0 // pred_region
    _
  $region37: #{mnist_vae_forward.4} parent=0 // pred_fallthru
    _
  // Predicated region
  $region38: #{mnist_vae_forward.4} parent=0 // pred_check
    _
  $region39: #{mnist_vae_forward.4} parent=0 // pred_check_branch
    %267 = sbr.rel (0) target = $region41
  $region40: #{mnist_vae_forward.4} parent=0 // pred_region
    _
  $region41: #{mnist_vae_forward.4} parent=0 // pred_fallthru
    _
  // Predicated region
  $region42: #{mnist_vae_forward.4} parent=0 // pred_check
    _
  $region43: #{mnist_vae_forward.4} parent=0 // pred_check_branch
    %269 = sbr.rel (0) target = $region45
  $region44: #{mnist_vae_forward.4} parent=0 // pred_region
    _
  $region45: #{mnist_vae_forward.4} parent=0 // pred_fallthru
    _

// kernel: mnist_vae_forward.3
$region0: #{mnist_vae_forward.3}
  #allocation0 [shape = 'u32[]', space=smem, size = 0x4, offset = 0x4, fixed_abs, tag = 'smem constant byte address 0x4 - core index']
  #allocation1 [shape = 'u32[144,128]{1,0:T(1,128)}', space=vmem, size = 0x12000, scoped, tag = 'internal scratch']
  %s0 = inlined_call_operand.vmem [shape: bf16[8,896], index: 0, kind: input, shape index: {}]
  %s1 = inlined_call_operand.hbm [shape: bf16[896,256], index: 1, kind: input, shape index: {}]
  %s2 = inlined_call_operand.hbm [shape: f32[1,256], index: 2, kind: input, shape index: {}]
  %s3 = inlined_call_operand.vmem [shape: f32[8,256], index: 3, kind: output, shape index: {0}]
  %s4 = inlined_call_operand.vmem [shape: f32[1,1,256], index: 4, kind: output, shape index: {1}]
  %s5 = inlined_call_operand.vmem [shape: f32[1,1,256], index: 5, kind: output, shape index: {2}]
  %6 = xla_tuple %s3, %s4, %s5
  %s7 = sld [smem:[#allocation0]]
  $region46: #{mnist_vae_forward.3} parent=0
    _
  %s9 = ssub.s32 1, %s7
  %s10 = scalar_select 0, %s9, %s7
  $region1: #{mnist_vae_forward.3} parent=0
    #allocation2 [shape = 'u8[458752]{0}', space=vmem, size = 0x70000, scoped, tag = 'input window, operand 1, single buffered']
    #allocation3 [shape = 's32[1]{0}', space=sflag, size = 0x4, scoped, tag = 'scoped memory for mnist_vae_forward.3']
    #allocation4 [shape = 'u8[1024]{0}', space=vmem, size = 0x400, scoped, tag = 'input window, operand 2, single buffered']
    #allocation5 [shape = 's32[1]{0}', space=sflag, size = 0x4, scoped, tag = 'scoped memory for mnist_vae_forward.3']
    %11 = vsyncpa [#allocation3], 0
    %12 = vsyncpa [#allocation5], 0
    // Predicated region
    $region2: #{mnist_vae_forward.3} parent=1 // pred_check
      _
    $region3: #{mnist_vae_forward.3} parent=1 // pred_check_branch
      %14 = sbr.rel (0) target = $region5
    $region4: #{mnist_vae_forward.3} parent=1 // pred_region
      _
    $region5: #{mnist_vae_forward.3} parent=1 // pred_fallthru
      _
    // Predicated region
    $region6: #{mnist_vae_forward.3} parent=1 // pred_check
      _
    $region7: #{mnist_vae_forward.3} parent=1 // pred_check_branch
      %16 = sbr.rel (0) target = $region9
    $region8: #{mnist_vae_forward.3} parent=1 // pred_region
      %s18 = ssub.s32 14336, 14336
      %19 = vsyncadd [#allocation3], %s18
      %s20 = sshll.u32 [#allocation2], 4
      %s21 = int_to_ptr.vmem [resolvable:$true] %s20
      %26 = dma.hbm_to_vmem [thread:$0]  %s1, 14336, %s21, [#allocation3], 128, 128, 8
    $region9: #{mnist_vae_forward.3} parent=1 // pred_fallthru
      _
    // Predicated region
    $region10: #{mnist_vae_forward.3} parent=1 // pred_check
      _
    $region11: #{mnist_vae_forward.3} parent=1 // pred_check_branch
      %28 = sbr.rel (0) target = $region13
    $region12: #{mnist_vae_forward.3} parent=1 // pred_region
      %s30 = ssub.s32 32, 32
      %31 = vsyncadd [#allocation5], %s30
      %s33 = sshll.u32 [#allocation4], 4
      %s34 = int_to_ptr.vmem [resolvable:$true] %s33
      %36 = dma.hbm_to_vmem [thread:$0]  %s2, 32, %s34, [#allocation5]
    $region13: #{mnist_vae_forward.3} parent=1 // pred_fallthru
      _
    // Predicated region
    $region14: #{mnist_vae_forward.3} parent=1 // pred_check
      _
    $region15: #{mnist_vae_forward.3} parent=1 // pred_check_branch
      %38 = sbr.rel (0) target = $region17
    $region16: #{mnist_vae_forward.3} parent=1 // pred_region
      %39 = dma.done [#allocation3], 14336
    $region17: #{mnist_vae_forward.3} parent=1 // pred_fallthru
      _
    // Predicated region
    $region18: #{mnist_vae_forward.3} parent=1 // pred_check
      _
    $region19: #{mnist_vae_forward.3} parent=1 // pred_check_branch
      %41 = sbr.rel (0) target = $region21
    $region20: #{mnist_vae_forward.3} parent=1 // pred_region
      %42 = dma.done [#allocation5], 32
    $region21: #{mnist_vae_forward.3} parent=1 // pred_fallthru
      _
    %v44 = vld [vmem:[%s0] sm:$0xff]
    %v45 = vld [vmem:[%s0 + $0x8] sm:$0xff]
    %v46 = vld [vmem:[%s0 + $0x10] sm:$0xff]
    %v47 = vld [vmem:[%s0 + $0x18] sm:$0xf]
    %v48 = vld [vmem:[#allocation2] sm:$0xff]
    %v49 = vld [vmem:[#allocation2 + $0x8] sm:$0xff]
    %v50 = vld [vmem:[#allocation2 + $0x10] sm:$0xff]
    %v51 = vld [vmem:[#allocation2 + $0x18] sm:$0xff]
    %v52 = vld [vmem:[#allocation2 + $0x20] sm:$0xff]
    %v53 = vld [vmem:[#allocation2 + $0x28] sm:$0xff]
    %v54 = vld [vmem:[#allocation2 + $0x30] sm:$0xff]
    %v55 = vld [vmem:[#allocation2 + $0x38] sm:$0xff]
    %v56 = vld [vmem:[#allocation2 + $0x40] sm:$0xff]
    %v57 = vld [vmem:[#allocation2 + $0x48] sm:$0xff]
    %v58 = vld [vmem:[#allocation2 + $0x50] sm:$0xff]
    %v59 = vld [vmem:[#allocation2 + $0x58] sm:$0xff]
    %v60 = vld [vmem:[#allocation2 + $0x60] sm:$0xff]
    %v61 = vld [vmem:[#allocation2 + $0x68] sm:$0xff]
    %v62 = vld [vmem:[#allocation2 + $0x70] sm:$0xff]
    %v63 = vld [vmem:[#allocation2 + $0x78] sm:$0xff]
    %v64 = vld [vmem:[#allocation2 + $0x80] sm:$0xff]
    %v65 = vld [vmem:[#allocation2 + $0x88] sm:$0xff]
    %v66 = vld [vmem:[#allocation2 + $0x90] sm:$0xff]
    %v67 = vld [vmem:[#allocation2 + $0x98] sm:$0xff]
    %v68 = vld [vmem:[#allocation2 + $0xa0] sm:$0xff]
    %v69 = vld [vmem:[#allocation2 + $0xa8] sm:$0xff]
    %v70 = vld [vmem:[#allocation2 + $0xb0] sm:$0xff]
    %v71 = vld [vmem:[#allocation2 + $0xb8] sm:$0xff]
    %v72 = vld [vmem:[#allocation2 + $0xc0] sm:$0xff]
    %v73 = vld [vmem:[#allocation2 + $0xc8] sm:$0xff]
    %v74 = vld [vmem:[#allocation2 + $0xd0] sm:$0xff]
    %v75 = vld [vmem:[#allocation2 + $0xd8] sm:$0xff]
    %v76 = vld [vmem:[#allocation2 + $0xe0] sm:$0xff]
    %v77 = vld [vmem:[#allocation2 + $0xe8] sm:$0xff]
    %v78 = vld [vmem:[#allocation2 + $0xf0] sm:$0xff]
    %v79 = vld [vmem:[#allocation2 + $0xf8] sm:$0xff]
    %v80 = vld [vmem:[#allocation2 + $0x100] sm:$0xff]
    %v81 = vld [vmem:[#allocation2 + $0x108] sm:$0xff]
    %v82 = vld [vmem:[#allocation2 + $0x110] sm:$0xff]
    %v83 = vld [vmem:[#allocation2 + $0x118] sm:$0xff]
    %v84 = vld [vmem:[#allocation2 + $0x120] sm:$0xff]
    %v85 = vld [vmem:[#allocation2 + $0x128] sm:$0xff]
    %v86 = vld [vmem:[#allocation2 + $0x130] sm:$0xff]
    %v87 = vld [vmem:[#allocation2 + $0x138] sm:$0xff]
    %v88 = vld [vmem:[#allocation2 + $0x140] sm:$0xff]
    %v89 = vld [vmem:[#allocation2 + $0x148] sm:$0xff]
    %v90 = vld [vmem:[#allocation2 + $0x150] sm:$0xff]
    %v91 = vld [vmem:[#allocation2 + $0x158] sm:$0xff]
    %v92 = vld [vmem:[#allocation2 + $0x160] sm:$0xff]
    %v93 = vld [vmem:[#allocation2 + $0x168] sm:$0xff]
    %v94 = vld [vmem:[#allocation2 + $0x170] sm:$0xff]
    %v95 = vld [vmem:[#allocation2 + $0x178] sm:$0xff]
    %v96 = vld [vmem:[#allocation2 + $0x180] sm:$0xff]
    %v97 = vld [vmem:[#allocation2 + $0x188] sm:$0xff]
    %v98 = vld [vmem:[#allocation2 + $0x190] sm:$0xff]
    %v99 = vld [vmem:[#allocation2 + $0x198] sm:$0xff]
    %v100 = vld [vmem:[#allocation2 + $0x1a0] sm:$0xff]
    %v101 = vld [vmem:[#allocation2 + $0x1a8] sm:$0xff]
    %v102 = vld [vmem:[#allocation2 + $0x1b0] sm:$0xff]
    %v103 = vld [vmem:[#allocation2 + $0x1b8] sm:$0xff]
    %v104 = vld [vmem:[#allocation2 + $0x1c0] sm:$0xff]
    %v105 = vld [vmem:[#allocation2 + $0x1c8] sm:$0xff]
    %v106 = vld [vmem:[#allocation2 + $0x1d0] sm:$0xff]
    %v107 = vld [vmem:[#allocation2 + $0x1d8] sm:$0xff]
    %v108 = vld [vmem:[#allocation2 + $0x1e0] sm:$0xff]
    %v109 = vld [vmem:[#allocation2 + $0x1e8] sm:$0xff]
    %v110 = vld [vmem:[#allocation2 + $0x1f0] sm:$0xff]
    %v111 = vld [vmem:[#allocation2 + $0x1f8] sm:$0xff]
    %v112 = vld [vmem:[#allocation2 + $0x200] sm:$0xff]
    %v113 = vld [vmem:[#allocation2 + $0x208] sm:$0xff]
    %v114 = vld [vmem:[#allocation2 + $0x210] sm:$0xff]
    %v115 = vld [vmem:[#allocation2 + $0x218] sm:$0xff]
    %v116 = vld [vmem:[#allocation2 + $0x220] sm:$0xff]
    %v117 = vld [vmem:[#allocation2 + $0x228] sm:$0xff]
    %v118 = vld [vmem:[#allocation2 + $0x230] sm:$0xff]
    %v119 = vld [vmem:[#allocation2 + $0x238] sm:$0xff]
    %v120 = vld [vmem:[#allocation2 + $0x240] sm:$0xff]
    %v121 = vld [vmem:[#allocation2 + $0x248] sm:$0xff]
    %v122 = vld [vmem:[#allocation2 + $0x250] sm:$0xff]
    %v123 = vld [vmem:[#allocation2 + $0x258] sm:$0xff]
    %v124 = vld [vmem:[#allocation2 + $0x260] sm:$0xff]
    %v125 = vld [vmem:[#allocation2 + $0x268] sm:$0xff]
    %v126 = vld [vmem:[#allocation2 + $0x270] sm:$0xff]
    %v127 = vld [vmem:[#allocation2 + $0x278] sm:$0xff]
    %v128 = vld [vmem:[#allocation2 + $0x280] sm:$0xff]
    %v129 = vld [vmem:[#allocation2 + $0x288] sm:$0xff]
    %v130 = vld [vmem:[#allocation2 + $0x290] sm:$0xff]
    %v131 = vld [vmem:[#allocation2 + $0x298] sm:$0xff]
    %v132 = vld [vmem:[#allocation2 + $0x2a0] sm:$0xff]
    %v133 = vld [vmem:[#allocation2 + $0x2a8] sm:$0xff]
    %v134 = vld [vmem:[#allocation2 + $0x2b0] sm:$0xff]
    %v135 = vld [vmem:[#allocation2 + $0x2b8] sm:$0xff]
    %v136 = vld [vmem:[#allocation2 + $0x2c0] sm:$0xff]
    %v137 = vld [vmem:[#allocation2 + $0x2c8] sm:$0xff]
    %v138 = vld [vmem:[#allocation2 + $0x2d0] sm:$0xff]
    %v139 = vld [vmem:[#allocation2 + $0x2d8] sm:$0xff]
    %v140 = vld [vmem:[#allocation2 + $0x2e0] sm:$0xff]
    %v141 = vld [vmem:[#allocation2 + $0x2e8] sm:$0xff]
    %v142 = vld [vmem:[#allocation2 + $0x2f0] sm:$0xff]
    %v143 = vld [vmem:[#allocation2 + $0x2f8] sm:$0xff]
    %v144 = vld [vmem:[#allocation2 + $0x300] sm:$0xff]
    %v145 = vld [vmem:[#allocation2 + $0x308] sm:$0xff]
    %v146 = vld [vmem:[#allocation2 + $0x310] sm:$0xff]
    %v147 = vld [vmem:[#allocation2 + $0x318] sm:$0xff]
    %v148 = vld [vmem:[#allocation2 + $0x320] sm:$0xff]
    %v149 = vld [vmem:[#allocation2 + $0x328] sm:$0xff]
    %v150 = vld [vmem:[#allocation2 + $0x330] sm:$0xff]
    %v151 = vld [vmem:[#allocation2 + $0x338] sm:$0xff]
    %v152 = vld [vmem:[#allocation2 + $0x340] sm:$0xff]
    %v153 = vld [vmem:[#allocation2 + $0x348] sm:$0xff]
    %v154 = vld [vmem:[#allocation2 + $0x350] sm:$0xff]
    %v155 = vld [vmem:[#allocation2 + $0x358] sm:$0xff]
    %v156 = vld [vmem:[#allocation2 + $0x360] sm:$0xff]
    %v157 = vld [vmem:[#allocation2 + $0x368] sm:$0xff]
    %v158 = vld [vmem:[#allocation2 + $0x370] sm:$0xff]
    %v159 = vld [vmem:[#allocation2 + $0x378] sm:$0xff]
    %v160 = vld [vmem:[#allocation4] sm:$0x3]
    %v162 = vlaneseq
    %v163 = vshrl.u32 %v162, 7
    %v164 = vsub.s32 0, %v163
    %v165 = vrot.slane %v160, %v164
    %v166 = vlaneseq
    %v167 = vshrl.u32 %v166, 7
    %v168 = vsub.s32 1, %v167
    %v169 = vrot.slane %v160, %v168
    %v176 = vunpack.c.l.b16 %v44
    %v177 = vunpack.c.h.b16 %v44
    %v178 = vunpack.c.l.b16 %v45
    %v179 = vunpack.c.h.b16 %v45
    %v180 = vunpack.c.l.b16 %v46
    %v181 = vunpack.c.h.b16 %v46
    %v182 = vunpack.c.l.b16 %v47
    %v183 = vpack.c.b16 %v176, %v176
    %v184 = vpack.c.b16 %v177, %v177
    %v185 = vpack.c.b16 %v178, %v178
    %v186 = vpack.c.b16 %v179, %v179
    %v187 = vpack.c.b16 %v180, %v180
    %v188 = vpack.c.b16 %v181, %v181
    %v189 = vpack.c.b16 %v182, %v182
    %v309 = vunpack.c.l.b16 %v48
    %v310 = vunpack.c.h.b16 %v48
    %v311 = vunpack.c.l.b16 %v49
    %v312 = vunpack.c.h.b16 %v49
    %v313 = vunpack.c.l.b16 %v50
    %v314 = vunpack.c.h.b16 %v50
    %v315 = vunpack.c.l.b16 %v51
    %v316 = vunpack.c.h.b16 %v51
    %v317 = vunpack.c.l.b16 %v52
    %v318 = vunpack.c.h.b16 %v52
    %v319 = vunpack.c.l.b16 %v53
    %v320 = vunpack.c.h.b16 %v53
    %v321 = vunpack.c.l.b16 %v54
    %v322 = vunpack.c.h.b16 %v54
    %v323 = vunpack.c.l.b16 %v55
    %v324 = vunpack.c.h.b16 %v55
    %v325 = vunpack.c.l.b16 %v56
    %v326 = vunpack.c.h.b16 %v56
    %v327 = vunpack.c.l.b16 %v57
    %v328 = vunpack.c.h.b16 %v57
    %v329 = vunpack.c.l.b16 %v58
    %v330 = vunpack.c.h.b16 %v58
    %v331 = vunpack.c.l.b16 %v59
    %v332 = vunpack.c.h.b16 %v59
    %v333 = vunpack.c.l.b16 %v60
    %v334 = vunpack.c.h.b16 %v60
    %v335 = vunpack.c.l.b16 %v61
    %v336 = vunpack.c.h.b16 %v61
    %v337 = vunpack.c.l.b16 %v62
    %v338 = vunpack.c.h.b16 %v62
    %v339 = vunpack.c.l.b16 %v63
    %v340 = vunpack.c.h.b16 %v63
    %v341 = vunpack.c.l.b16 %v64
    %v342 = vunpack.c.h.b16 %v64
    %v343 = vunpack.c.l.b16 %v65
    %v344 = vunpack.c.h.b16 %v65
    %v345 = vunpack.c.l.b16 %v66
    %v346 = vunpack.c.h.b16 %v66
    %v347 = vunpack.c.l.b16 %v67
    %v348 = vunpack.c.h.b16 %v67
    %v349 = vunpack.c.l.b16 %v68
    %v350 = vunpack.c.h.b16 %v68
    %v351 = vunpack.c.l.b16 %v69
    %v352 = vunpack.c.h.b16 %v69
    %v353 = vunpack.c.l.b16 %v70
    %v354 = vunpack.c.h.b16 %v70
    %v355 = vunpack.c.l.b16 %v71
    %v356 = vunpack.c.h.b16 %v71
    %v357 = vunpack.c.l.b16 %v72
    %v358 = vunpack.c.h.b16 %v72
    %v359 = vunpack.c.l.b16 %v73
    %v360 = vunpack.c.h.b16 %v73
    %v361 = vunpack.c.l.b16 %v74
    %v362 = vunpack.c.h.b16 %v74
    %v363 = vunpack.c.l.b16 %v75
    %v364 = vunpack.c.h.b16 %v75
    %v365 = vunpack.c.l.b16 %v76
    %v366 = vunpack.c.h.b16 %v76
    %v367 = vunpack.c.l.b16 %v77
    %v368 = vunpack.c.h.b16 %v77
    %v369 = vunpack.c.l.b16 %v78
    %v370 = vunpack.c.h.b16 %v78
    %v371 = vunpack.c.l.b16 %v79
    %v372 = vunpack.c.h.b16 %v79
    %v373 = vunpack.c.l.b16 %v80
    %v374 = vunpack.c.h.b16 %v80
    %v375 = vunpack.c.l.b16 %v81
    %v376 = vunpack.c.h.b16 %v81
    %v377 = vunpack.c.l.b16 %v82
    %v378 = vunpack.c.h.b16 %v82
    %v379 = vunpack.c.l.b16 %v83
    %v380 = vunpack.c.h.b16 %v83
    %v381 = vunpack.c.l.b16 %v84
    %v382 = vunpack.c.h.b16 %v84
    %v383 = vunpack.c.l.b16 %v85
    %v384 = vunpack.c.h.b16 %v85
    %v385 = vunpack.c.l.b16 %v86
    %v386 = vunpack.c.h.b16 %v86
    %v387 = vunpack.c.l.b16 %v87
    %v388 = vunpack.c.h.b16 %v87
    %v389 = vunpack.c.l.b16 %v88
    %v390 = vunpack.c.h.b16 %v88
    %v391 = vunpack.c.l.b16 %v89
    %v392 = vunpack.c.h.b16 %v89
    %v393 = vunpack.c.l.b16 %v90
    %v394 = vunpack.c.h.b16 %v90
    %v395 = vunpack.c.l.b16 %v91
    %v396 = vunpack.c.h.b16 %v91
    %v397 = vunpack.c.l.b16 %v92
    %v398 = vunpack.c.h.b16 %v92
    %v399 = vunpack.c.l.b16 %v93
    %v400 = vunpack.c.h.b16 %v93
    %v401 = vunpack.c.l.b16 %v94
    %v402 = vunpack.c.h.b16 %v94
    %v403 = vunpack.c.l.b16 %v95
    %v404 = vunpack.c.h.b16 %v95
    %v405 = vunpack.c.l.b16 %v96
    %v406 = vunpack.c.h.b16 %v96
    %v407 = vunpack.c.l.b16 %v97
    %v408 = vunpack.c.h.b16 %v97
    %v409 = vunpack.c.l.b16 %v98
    %v410 = vunpack.c.h.b16 %v98
    %v411 = vunpack.c.l.b16 %v99
    %v412 = vunpack.c.h.b16 %v99
    %v413 = vunpack.c.l.b16 %v100
    %v414 = vunpack.c.h.b16 %v100
    %v415 = vunpack.c.l.b16 %v101
    %v416 = vunpack.c.h.b16 %v101
    %v417 = vunpack.c.l.b16 %v102
    %v418 = vunpack.c.h.b16 %v102
    %v419 = vunpack.c.l.b16 %v103
    %v420 = vunpack.c.h.b16 %v103
    %v421 = vunpack.c.l.b16 %v104
    %v422 = vunpack.c.h.b16 %v104
    %v423 = vunpack.c.l.b16 %v105
    %v424 = vunpack.c.h.b16 %v105
    %v425 = vunpack.c.l.b16 %v106
    %v426 = vunpack.c.h.b16 %v106
    %v427 = vunpack.c.l.b16 %v107
    %v428 = vunpack.c.h.b16 %v107
    %v429 = vunpack.c.l.b16 %v108
    %v430 = vunpack.c.h.b16 %v108
    %v431 = vunpack.c.l.b16 %v109
    %v432 = vunpack.c.h.b16 %v109
    %v433 = vunpack.c.l.b16 %v110
    %v434 = vunpack.c.h.b16 %v110
    %v435 = vunpack.c.l.b16 %v111
    %v436 = vunpack.c.h.b16 %v111
    %v437 = vunpack.c.l.b16 %v112
    %v438 = vunpack.c.h.b16 %v112
    %v439 = vunpack.c.l.b16 %v113
    %v440 = vunpack.c.h.b16 %v113
    %v441 = vunpack.c.l.b16 %v114
    %v442 = vunpack.c.h.b16 %v114
    %v443 = vunpack.c.l.b16 %v115
    %v444 = vunpack.c.h.b16 %v115
    %v445 = vunpack.c.l.b16 %v116
    %v446 = vunpack.c.h.b16 %v116
    %v447 = vunpack.c.l.b16 %v117
    %v448 = vunpack.c.h.b16 %v117
    %v449 = vunpack.c.l.b16 %v118
    %v450 = vunpack.c.h.b16 %v118
    %v451 = vunpack.c.l.b16 %v119
    %v452 = vunpack.c.h.b16 %v119
    %v453 = vunpack.c.l.b16 %v120
    %v454 = vunpack.c.h.b16 %v120
    %v455 = vunpack.c.l.b16 %v121
    %v456 = vunpack.c.h.b16 %v121
    %v457 = vunpack.c.l.b16 %v122
    %v458 = vunpack.c.h.b16 %v122
    %v459 = vunpack.c.l.b16 %v123
    %v460 = vunpack.c.h.b16 %v123
    %v461 = vunpack.c.l.b16 %v124
    %v462 = vunpack.c.h.b16 %v124
    %v463 = vunpack.c.l.b16 %v125
    %v464 = vunpack.c.h.b16 %v125
    %v465 = vunpack.c.l.b16 %v126
    %v466 = vunpack.c.h.b16 %v126
    %v467 = vunpack.c.l.b16 %v127
    %v468 = vunpack.c.h.b16 %v127
    %v469 = vunpack.c.l.b16 %v128
    %v470 = vunpack.c.h.b16 %v128
    %v471 = vunpack.c.l.b16 %v129
    %v472 = vunpack.c.h.b16 %v129
    %v473 = vunpack.c.l.b16 %v130
    %v474 = vunpack.c.h.b16 %v130
    %v475 = vunpack.c.l.b16 %v131
    %v476 = vunpack.c.h.b16 %v131
    %v477 = vunpack.c.l.b16 %v132
    %v478 = vunpack.c.h.b16 %v132
    %v479 = vunpack.c.l.b16 %v133
    %v480 = vunpack.c.h.b16 %v133
    %v481 = vunpack.c.l.b16 %v134
    %v482 = vunpack.c.h.b16 %v134
    %v483 = vunpack.c.l.b16 %v135
    %v484 = vunpack.c.h.b16 %v135
    %v485 = vunpack.c.l.b16 %v136
    %v486 = vunpack.c.h.b16 %v136
    %v487 = vunpack.c.l.b16 %v137
    %v488 = vunpack.c.h.b16 %v137
    %v489 = vunpack.c.l.b16 %v138
    %v490 = vunpack.c.h.b16 %v138
    %v491 = vunpack.c.l.b16 %v139
    %v492 = vunpack.c.h.b16 %v139
    %v493 = vunpack.c.l.b16 %v140
    %v494 = vunpack.c.h.b16 %v140
    %v495 = vunpack.c.l.b16 %v141
    %v496 = vunpack.c.h.b16 %v141
    %v497 = vunpack.c.l.b16 %v142
    %v498 = vunpack.c.h.b16 %v142
    %v499 = vunpack.c.l.b16 %v143
    %v500 = vunpack.c.h.b16 %v143
    %v501 = vunpack.c.l.b16 %v144
    %v502 = vunpack.c.h.b16 %v144
    %v503 = vunpack.c.l.b16 %v145
    %v504 = vunpack.c.h.b16 %v145
    %v505 = vunpack.c.l.b16 %v146
    %v506 = vunpack.c.h.b16 %v146
    %v507 = vunpack.c.l.b16 %v147
    %v508 = vunpack.c.h.b16 %v147
    %v509 = vunpack.c.l.b16 %v148
    %v510 = vunpack.c.h.b16 %v148
    %v511 = vunpack.c.l.b16 %v149
    %v512 = vunpack.c.h.b16 %v149
    %v513 = vunpack.c.l.b16 %v150
    %v514 = vunpack.c.h.b16 %v150
    %v515 = vunpack.c.l.b16 %v151
    %v516 = vunpack.c.h.b16 %v151
    %v517 = vunpack.c.l.b16 %v152
    %v518 = vunpack.c.h.b16 %v152
    %v519 = vunpack.c.l.b16 %v153
    %v520 = vunpack.c.h.b16 %v153
    %v521 = vunpack.c.l.b16 %v154
    %v522 = vunpack.c.h.b16 %v154
    %v523 = vunpack.c.l.b16 %v155
    %v524 = vunpack.c.h.b16 %v155
    %v525 = vunpack.c.l.b16 %v156
    %v526 = vunpack.c.h.b16 %v156
    %v527 = vunpack.c.l.b16 %v157
    %v528 = vunpack.c.h.b16 %v157
    %v529 = vunpack.c.l.b16 %v158
    %v530 = vunpack.c.h.b16 %v158
    %v531 = vunpack.c.l.b16 %v159
    %v532 = vunpack.c.h.b16 %v159
    %v533 = vpack.c.b16 %v311, %v309
    %v534 = vpack.c.b16 %v312, %v310
    %v535 = vpack.c.b16 %v315, %v313
    %v536 = vpack.c.b16 %v316, %v314
    %v537 = vpack.c.b16 %v319, %v317
    %v538 = vpack.c.b16 %v320, %v318
    %v539 = vpack.c.b16 %v323, %v321
    %v540 = vpack.c.b16 %v324, %v322
    %v541 = vpack.c.b16 %v327, %v325
    %v542 = vpack.c.b16 %v328, %v326
    %v543 = vpack.c.b16 %v331, %v329
    %v544 = vpack.c.b16 %v332, %v330
    %v545 = vpack.c.b16 %v335, %v333
    %v546 = vpack.c.b16 %v336, %v334
    %v547 = vpack.c.b16 %v339, %v337
    %v548 = vpack.c.b16 %v340, %v338
    %v549 = vpack.c.b16 %v343, %v341
    %v550 = vpack.c.b16 %v344, %v342
    %v551 = vpack.c.b16 %v347, %v345
    %v552 = vpack.c.b16 %v348, %v346
    %v553 = vpack.c.b16 %v351, %v349
    %v554 = vpack.c.b16 %v352, %v350
    %v555 = vpack.c.b16 %v355, %v353
    %v556 = vpack.c.b16 %v356, %v354
    %v557 = vpack.c.b16 %v359, %v357
    %v558 = vpack.c.b16 %v360, %v358
    %v559 = vpack.c.b16 %v363, %v361
    %v560 = vpack.c.b16 %v364, %v362
    %v561 = vpack.c.b16 %v367, %v365
    %v562 = vpack.c.b16 %v368, %v366
    %v563 = vpack.c.b16 %v371, %v369
    %v564 = vpack.c.b16 %v372, %v370
    %v565 = vpack.c.b16 %v375, %v373
    %v566 = vpack.c.b16 %v376, %v374
    %v567 = vpack.c.b16 %v379, %v377
    %v568 = vpack.c.b16 %v380, %v378
    %v569 = vpack.c.b16 %v383, %v381
    %v570 = vpack.c.b16 %v384, %v382
    %v571 = vpack.c.b16 %v387, %v385
    %v572 = vpack.c.b16 %v388, %v386
    %v573 = vpack.c.b16 %v391, %v389
    %v574 = vpack.c.b16 %v392, %v390
    %v575 = vpack.c.b16 %v395, %v393
    %v576 = vpack.c.b16 %v396, %v394
    %v577 = vpack.c.b16 %v399, %v397
    %v578 = vpack.c.b16 %v400, %v398
    %v579 = vpack.c.b16 %v403, %v401
    %v580 = vpack.c.b16 %v404, %v402
    %v581 = vpack.c.b16 %v407, %v405
    %v582 = vpack.c.b16 %v408, %v406
    %v583 = vpack.c.b16 %v411, %v409
    %v584 = vpack.c.b16 %v412, %v410
    %v585 = vpack.c.b16 %v415, %v413
    %v586 = vpack.c.b16 %v416, %v414
    %v587 = vpack.c.b16 %v419, %v417
    %v588 = vpack.c.b16 %v420, %v418
    %v589 = vpack.c.b16 %v423, %v421
    %v590 = vpack.c.b16 %v424, %v422
    %v591 = vpack.c.b16 %v427, %v425
    %v592 = vpack.c.b16 %v428, %v426
    %v593 = vpack.c.b16 %v431, %v429
    %v594 = vpack.c.b16 %v432, %v430
    %v595 = vpack.c.b16 %v435, %v433
    %v596 = vpack.c.b16 %v436, %v434
    %v597 = vpack.c.b16 %v439, %v437
    %v598 = vpack.c.b16 %v440, %v438
    %v599 = vpack.c.b16 %v443, %v441
    %v600 = vpack.c.b16 %v444, %v442
    %v601 = vpack.c.b16 %v447, %v445
    %v602 = vpack.c.b16 %v448, %v446
    %v603 = vpack.c.b16 %v451, %v449
    %v604 = vpack.c.b16 %v452, %v450
    %v605 = vpack.c.b16 %v455, %v453
    %v606 = vpack.c.b16 %v456, %v454
    %v607 = vpack.c.b16 %v459, %v457
    %v608 = vpack.c.b16 %v460, %v458
    %v609 = vpack.c.b16 %v463, %v461
    %v610 = vpack.c.b16 %v464, %v462
    %v611 = vpack.c.b16 %v467, %v465
    %v612 = vpack.c.b16 %v468, %v466
    %v613 = vpack.c.b16 %v471, %v469
    %v614 = vpack.c.b16 %v472, %v470
    %v615 = vpack.c.b16 %v475, %v473
    %v616 = vpack.c.b16 %v476, %v474
    %v617 = vpack.c.b16 %v479, %v477
    %v618 = vpack.c.b16 %v480, %v478
    %v619 = vpack.c.b16 %v483, %v481
    %v620 = vpack.c.b16 %v484, %v482
    %v621 = vpack.c.b16 %v487, %v485
    %v622 = vpack.c.b16 %v488, %v486
    %v623 = vpack.c.b16 %v491, %v489
    %v624 = vpack.c.b16 %v492, %v490
    %v625 = vpack.c.b16 %v495, %v493
    %v626 = vpack.c.b16 %v496, %v494
    %v627 = vpack.c.b16 %v499, %v497
    %v628 = vpack.c.b16 %v500, %v498
    %v629 = vpack.c.b16 %v503, %v501
    %v630 = vpack.c.b16 %v504, %v502
    %v631 = vpack.c.b16 %v507, %v505
    %v632 = vpack.c.b16 %v508, %v506
    %v633 = vpack.c.b16 %v511, %v509
    %v634 = vpack.c.b16 %v512, %v510
    %v635 = vpack.c.b16 %v515, %v513
    %v636 = vpack.c.b16 %v516, %v514
    %v637 = vpack.c.b16 %v519, %v517
    %v638 = vpack.c.b16 %v520, %v518
    %v639 = vpack.c.b16 %v523, %v521
    %v640 = vpack.c.b16 %v524, %v522
    %v641 = vpack.c.b16 %v527, %v525
    %v642 = vpack.c.b16 %v528, %v526
    %v643 = vpack.c.b16 %v531, %v529
    %v644 = vpack.c.b16 %v532, %v530
    %757 = vmatprep.subr.bf16.mxu0 %v548
    %758 = vmatpush1.bf16.msra.mxu0 %v547
    %759 = vmatprep.subr.bf16.mxu0 %v546
    %760 = vmatpush1.bf16.msra.mxu0 %v545
    %761 = vmatprep.subr.bf16.mxu0 %v544
    %762 = vmatpush1.bf16.msra.mxu0 %v543
    %763 = vmatprep.subr.bf16.mxu0 %v542
    %764 = vmatpush1.bf16.msra.mxu0 %v541
    %765 = vmatprep.subr.bf16.mxu0 %v540
    %766 = vmatpush1.bf16.msra.mxu0 %v539
    %767 = vmatprep.subr.bf16.mxu0 %v538
    %768 = vmatpush1.bf16.msra.mxu0 %v537
    %769 = vmatprep.subr.bf16.mxu0 %v536
    %770 = vmatpush1.bf16.msra.mxu0 %v535
    %771 = vmatprep.subr.bf16.mxu0 %v534
    %772 = vmatpush1.bf16.msra.mxu0 %v533
    %773 = vmatprep.subr.bf16.mxu0 %v564
    %774 = vmatpush2.bf16.msra.mxu0 %v563
    %775 = vmatprep.subr.bf16.mxu0 %v562
    %776 = vmatpush2.bf16.msra.mxu0 %v561
    %777 = vmatprep.subr.bf16.mxu0 %v560
    %778 = vmatpush2.bf16.msra.mxu0 %v559
    %779 = vmatprep.subr.bf16.mxu0 %v558
    %780 = vmatpush2.bf16.msra.mxu0 %v557
    %781 = vmatprep.subr.bf16.mxu0 %v556
    %782 = vmatpush2.bf16.msra.mxu0 %v555
    %783 = vmatprep.subr.bf16.mxu0 %v554
    %784 = vmatpush2.bf16.msra.mxu0 %v553
    %785 = vmatprep.subr.bf16.mxu0 %v552
    %786 = vmatpush2.bf16.msra.mxu0 %v551
    %787 = vmatprep.subr.bf16.mxu0 %v550
    %788 = vmatpush2.bf16.msra.mxu0 %v549
    %789 = vmatprep.mubr.bf16.mxu0 %v184
    %790 = vmatmul.mubr.bf16.gmra.mxu0 %v183
    %v791 = vpop.f32.mrf.mxu0
    %v792 = vadd.f32 %v165, %v791
    %v793 = vpop.f32.mrf.mxu0
    %v794 = vadd.f32 %v169, %v793
    %v795 = vpop.f32.mrf.mxu0
    %v796 = vpop.f32.mrf.mxu0
    %797 = vdwg.mxu0
    %798 = vmatprep.subr.bf16.mxu0 %v580
    %799 = vmatpush1.bf16.msra.mxu0 %v579
    %800 = vmatprep.subr.bf16.mxu0 %v578
    %801 = vmatpush1.bf16.msra.mxu0 %v577
    %802 = vmatprep.subr.bf16.mxu0 %v576
    %803 = vmatpush1.bf16.msra.mxu0 %v575
    %804 = vmatprep.subr.bf16.mxu0 %v574
    %805 = vmatpush1.bf16.msra.mxu0 %v573
    %806 = vmatprep.subr.bf16.mxu0 %v572
    %807 = vmatpush1.bf16.msra.mxu0 %v571
    %808 = vmatprep.subr.bf16.mxu0 %v570
    %809 = vmatpush1.bf16.msra.mxu0 %v569
    %810 = vmatprep.subr.bf16.mxu0 %v568
    %811 = vmatpush1.bf16.msra.mxu0 %v567
    %812 = vmatprep.subr.bf16.mxu0 %v566
    %813 = vmatpush1.bf16.msra.mxu0 %v565
    %814 = vmatprep.subr.bf16.mxu0 %v596
    %815 = vmatpush2.bf16.msra.mxu0 %v595
    %816 = vmatprep.subr.bf16.mxu0 %v594
    %817 = vmatpush2.bf16.msra.mxu0 %v593
    %818 = vmatprep.subr.bf16.mxu0 %v592
    %819 = vmatpush2.bf16.msra.mxu0 %v591
    %820 = vmatprep.subr.bf16.mxu0 %v590
    %821 = vmatpush2.bf16.msra.mxu0 %v589
    %822 = vmatprep.subr.bf16.mxu0 %v588
    %823 = vmatpush2.bf16.msra.mxu0 %v587
    %824 = vmatprep.subr.bf16.mxu0 %v586
    %825 = vmatpush2.bf16.msra.mxu0 %v585
    %826 = vmatprep.subr.bf16.mxu0 %v584
    %827 = vmatpush2.bf16.msra.mxu0 %v583
    %828 = vmatprep.subr.bf16.mxu0 %v582
    %829 = vmatpush2.bf16.msra.mxu0 %v581
    %830 = vmatprep.mubr.bf16.mxu0 %v186
    %831 = vmatmul.mubr.bf16.gmra.mxu0 %v185
    %v832 = vpop.f32.mrf.mxu0
    %v833 = vadd.f32 %v792, %v832
    %v834 = vpop.f32.mrf.mxu0
    %v835 = vadd.f32 %v794, %v834
    %v836 = vpop.f32.mrf.mxu0
    %v837 = vpop.f32.mrf.mxu0
    %838 = vdwg.mxu0
    %839 = vmatprep.subr.bf16.mxu0 %v612
    %840 = vmatpush1.bf16.msra.mxu0 %v611
    %841 = vmatprep.subr.bf16.mxu0 %v610
    %842 = vmatpush1.bf16.msra.mxu0 %v609
    %843 = vmatprep.subr.bf16.mxu0 %v608
    %844 = vmatpush1.bf16.msra.mxu0 %v607
    %845 = vmatprep.subr.bf16.mxu0 %v606
    %846 = vmatpush1.bf16.msra.mxu0 %v605
    %847 = vmatprep.subr.bf16.mxu0 %v604
    %848 = vmatpush1.bf16.msra.mxu0 %v603
    %849 = vmatprep.subr.bf16.mxu0 %v602
    %850 = vmatpush1.bf16.msra.mxu0 %v601
    %851 = vmatprep.subr.bf16.mxu0 %v600
    %852 = vmatpush1.bf16.msra.mxu0 %v599
    %853 = vmatprep.subr.bf16.mxu0 %v598
    %854 = vmatpush1.bf16.msra.mxu0 %v597
    %855 = vmatprep.subr.bf16.mxu0 %v628
    %856 = vmatpush2.bf16.msra.mxu0 %v627
    %857 = vmatprep.subr.bf16.mxu0 %v626
    %858 = vmatpush2.bf16.msra.mxu0 %v625
    %859 = vmatprep.subr.bf16.mxu0 %v624
    %860 = vmatpush2.bf16.msra.mxu0 %v623
    %861 = vmatprep.subr.bf16.mxu0 %v622
    %862 = vmatpush2.bf16.msra.mxu0 %v621
    %863 = vmatprep.subr.bf16.mxu0 %v620
    %864 = vmatpush2.bf16.msra.mxu0 %v619
    %865 = vmatprep.subr.bf16.mxu0 %v618
    %866 = vmatpush2.bf16.msra.mxu0 %v617
    %867 = vmatprep.subr.bf16.mxu0 %v616
    %868 = vmatpush2.bf16.msra.mxu0 %v615
    %869 = vmatprep.subr.bf16.mxu0 %v614
    %870 = vmatpush2.bf16.msra.mxu0 %v613
    %871 = vmatprep.mubr.bf16.mxu0 %v188
    %872 = vmatmul.mubr.bf16.gmra.mxu0 %v187
    %v873 = vpop.f32.mrf.mxu0
    %v874 = vadd.f32 %v833, %v873
    %v875 = vpop.f32.mrf.mxu0
    %v876 = vadd.f32 %v835, %v875
    %v877 = vpop.f32.mrf.mxu0
    %v878 = vpop.f32.mrf.mxu0
    %879 = vdwg.mxu0
    %880 = vmatprep.subr.bf16.mxu0 %v644
    %881 = vmatpush1.bf16.msra.mxu0 %v643
    %882 = vmatprep.subr.bf16.mxu0 %v642
    %883 = vmatpush1.bf16.msra.mxu0 %v641
    %884 = vmatprep.subr.bf16.mxu0 %v640
    %885 = vmatpush1.bf16.msra.mxu0 %v639
    %886 = vmatprep.subr.bf16.mxu0 %v638
    %887 = vmatpush1.bf16.msra.mxu0 %v637
    %888 = vmatprep.subr.bf16.mxu0 %v636
    %889 = vmatpush1.bf16.msra.mxu0 %v635
    %890 = vmatprep.subr.bf16.mxu0 %v634
    %891 = vmatpush1.bf16.msra.mxu0 %v633
    %892 = vmatprep.subr.bf16.mxu0 %v632
    %893 = vmatpush1.bf16.msra.mxu0 %v631
    %894 = vmatprep.subr.bf16.mxu0 %v630
    %895 = vmatpush1.bf16.msra.mxu0 %v629
    %896 = vmatprep.subr.bf16.mxu0 0
    %897 = vmatpush2.bf16.msra.mxu0 0
    %898 = vmatprep.subr.bf16.mxu0 0
    %899 = vmatpush2.bf16.msra.mxu0 0
    %900 = vmatprep.subr.bf16.mxu0 0
    %901 = vmatpush2.bf16.msra.mxu0 0
    %902 = vmatprep.subr.bf16.mxu0 0
    %903 = vmatpush2.bf16.msra.mxu0 0
    %904 = vmatprep.subr.bf16.mxu0 0
    %905 = vmatpush2.bf16.msra.mxu0 0
    %906 = vmatprep.subr.bf16.mxu0 0
    %907 = vmatpush2.bf16.msra.mxu0 0
    %908 = vmatprep.subr.bf16.mxu0 0
    %909 = vmatpush2.bf16.msra.mxu0 0
    %910 = vmatprep.subr.bf16.mxu0 0
    %911 = vmatpush2.bf16.msra.mxu0 0
    %912 = vmatprep.mubr.bf16.mxu0 0
    %913 = vmatmul.mubr.bf16.gmra.mxu0 %v189
    %v914 = vpop.f32.mrf.mxu0
    %v915 = vadd.f32 %v874, %v914
    %v916 = vpop.f32.mrf.mxu0
    %v917 = vadd.f32 %v876, %v916
    %v918 = vpop.f32.mrf.mxu0
    %v919 = vpop.f32.mrf.mxu0
    %920 = vdwg.mxu0
    %921 = vst [vmem:[%s3] sm:$0xff] %v915
    %922 = vst [vmem:[%s3 + $0x8] sm:$0xff] %v917
    %v923 = vlaneseq
    %v924 = vshrl.u32 %v923, 7
    %s925 = smul.u32 0, 8
    %v926 = vstv %s925
    %v927 = vadd.s32 %v924, %v926
    %vm928 = vcmp.lt.s32.totalorder %v927, 2
    %v929 = vsel %vm928, 1, 0
    %v930 = vcvt.s32.f32 %v929
    %v931 = vmul.f32 %v915, %v930
    %v932 = vmul.f32 %v917, %v930
    %v933 = vrot.slane %v931, 4
    %v934 = vadd.f32 %v931, %v933
    %v935 = vrot.slane %v934, 2
    %v936 = vadd.f32 %v934, %v935
    %v937 = vrot.slane %v936, 1
    %v938 = vadd.f32 %v936, %v937
    %v939 = vrot.slane %v932, 4
    %v940 = vadd.f32 %v932, %v939
    %v941 = vrot.slane %v940, 2
    %v942 = vadd.f32 %v940, %v941
    %v943 = vrot.slane %v942, 1
    %v944 = vadd.f32 %v942, %v943
    %v947 = vcombine.low %v938, %v944
    %v949 = vunpack.c.l.s4 1966171168
    %v950 = vunpack.c.0.s8 %v949
    %v951 = vlaneseq
    %v952 = vshrl.u32 %v951, 7
    %v953 = vsub.s32 %v950, %v952
    %v954 = vrot.slane %v947, %v953
    %v956 = vunpack.c.l.s4 1966171168
    %v957 = vunpack.c.0.s8 %v956
    %v958 = vlaneseq
    %v959 = vshrl.u32 %v958, 7
    %v960 = vsub.s32 %v957, %v959
    %v961 = vrot.slane %v954, %v960
    %v963 = vlaneseq
    %vm964 = vcmp.ge.s32.totalorder %v963, 0
    %vm965 = vcmp.lt.s32.totalorder %v963, 256
    %vm966 = vmand %vm964, %vm965
    %967 = vst.msk [vmem:[%s4] sm:$0x3] %vm966, %v961
    %v968 = vmul.f32 %v931, %v915
    %v969 = vmul.f32 %v932, %v917
    %v970 = vrot.slane %v968, 4
    %v971 = vadd.f32 %v968, %v970
    %v972 = vrot.slane %v971, 2
    %v973 = vadd.f32 %v971, %v972
    %v974 = vrot.slane %v973, 1
    %v975 = vadd.f32 %v973, %v974
    %v976 = vrot.slane %v969, 4
    %v977 = vadd.f32 %v969, %v976
    %v978 = vrot.slane %v977, 2
    %v979 = vadd.f32 %v977, %v978
    %v980 = vrot.slane %v979, 1
    %v981 = vadd.f32 %v979, %v980
    %v984 = vcombine.low %v975, %v981
    %v986 = vunpack.c.l.s4 1966171168
    %v987 = vunpack.c.0.s8 %v986
    %v988 = vlaneseq
    %v989 = vshrl.u32 %v988, 7
    %v990 = vsub.s32 %v987, %v989
    %v991 = vrot.slane %v984, %v990
    %v993 = vunpack.c.l.s4 1966171168
    %v994 = vunpack.c.0.s8 %v993
    %v995 = vlaneseq
    %v996 = vshrl.u32 %v995, 7
    %v997 = vsub.s32 %v994, %v996
    %v998 = vrot.slane %v991, %v997
    %1000 = vst.msk [vmem:[%s5] sm:$0x3] %vm966, %v998
    // Predicated region
    $region22: #{mnist_vae_forward.3} parent=1 // pred_check
      _
    $region23: #{mnist_vae_forward.3} parent=1 // pred_check_branch
      %1002 = sbr.rel (0) target = $region25
    $region24: #{mnist_vae_forward.3} parent=1 // pred_region
      _
    $region25: #{mnist_vae_forward.3} parent=1 // pred_fallthru
      _
    // Predicated region
    $region26: #{mnist_vae_forward.3} parent=1 // pred_check
      _
    $region27: #{mnist_vae_forward.3} parent=1 // pred_check_branch
      %1004 = sbr.rel (0) target = $region29
    $region28: #{mnist_vae_forward.3} parent=1 // pred_region
      _
    $region29: #{mnist_vae_forward.3} parent=1 // pred_fallthru
      _
    // Predicated region
    $region30: #{mnist_vae_forward.3} parent=1 // pred_check
      _
    $region31: #{mnist_vae_forward.3} parent=1 // pred_check_branch
      %1006 = sbr.rel (0) target = $region33
    $region32: #{mnist_vae_forward.3} parent=1 // pred_region
      _
    $region33: #{mnist_vae_forward.3} parent=1 // pred_fallthru
      _
    // Predicated region
    $region34: #{mnist_vae_forward.3} parent=1 // pred_check
      _
    $region35: #{mnist_vae_forward.3} parent=1 // pred_check_branch
      %1008 = sbr.rel (0) target = $region37
    $region36: #{mnist_vae_forward.3} parent=1 // pred_region
      _
    $region37: #{mnist_vae_forward.3} parent=1 // pred_fallthru
      _
    // Predicated region
    $region38: #{mnist_vae_forward.3} parent=1 // pred_check
      _
    $region39: #{mnist_vae_forward.3} parent=1 // pred_check_branch
      %1010 = sbr.rel (0) target = $region41
    $region40: #{mnist_vae_forward.3} parent=1 // pred_region
      _
    $region41: #{mnist_vae_forward.3} parent=1 // pred_fallthru
      _
    // Predicated region
    $region42: #{mnist_vae_forward.3} parent=1 // pred_check
      _
    $region43: #{mnist_vae_forward.3} parent=1 // pred_check_branch
      %1012 = sbr.rel (0) target = $region45
    $region44: #{mnist_vae_forward.3} parent=1 // pred_region
      _
    $region45: #{mnist_vae_forward.3} parent=1 // pred_fallthru
      _
    %1013 = vsyncpa [#allocation3], 1
    %1014 = vsyncpa [#allocation5], 1

// kernel: mnist_vae_forward.5
$region0: #{mnist_vae_forward.5}
  #allocation0 [shape = 'u32[]', space=smem, size = 0x4, offset = 0x4, fixed_abs, tag = 'smem constant byte address 0x4 - core index']
  #allocation1 [shape = 'u32[144,128]{1,0:T(1,128)}', space=vmem, size = 0x12000, scoped, tag = 'internal scratch']
  %s0 = inlined_call_operand.vmem [shape: f32[8,128], index: 0, kind: input, shape index: {}]
  %s1 = inlined_call_operand.vmem [shape: f32[1,128], index: 1, kind: input, shape index: {}]
  %s2 = inlined_call_operand.vmem [shape: f32[1,128], index: 2, kind: input, shape index: {}]
  %s3 = inlined_call_operand.vmem [shape: f32[8,128], index: 3, kind: input, shape index: {}]
  %s4 = inlined_call_operand.vmem [shape: bf16[128,256], index: 4, kind: input, shape index: {}]
  %s5 = inlined_call_operand.vmem [shape: f32[1,256], index: 5, kind: input, shape index: {}]
  %s6 = inlined_call_operand.hbm [shape: bf16[128,128], index: 6, kind: input, shape index: {}]
  %s7 = inlined_call_operand.vmem [shape: f32[1,128], index: 7, kind: input, shape index: {}]
  %s8 = inlined_call_operand.vmem [shape: bf16[128,256], index: 8, kind: input, shape index: {}]
  %s9 = inlined_call_operand.vmem [shape: f32[1,256], index: 9, kind: input, shape index: {}]
  %s10 = inlined_call_operand.vmem [shape: bf16[256,896], index: 10, kind: input, shape index: {}]
  %s11 = inlined_call_operand.vmem [shape: f32[1,896], index: 11, kind: input, shape index: {}]
  %s12 = inlined_call_operand.vmem [shape: f32[8,896], index: 12, kind: output, shape index: {0}]
  %s13 = inlined_call_operand.vmem [shape: f32[8,1], index: 13, kind: output, shape index: {1}]
  %14 = xla_tuple %s12, %s13
  %s15 = sld [smem:[#allocation0]]
  $region70: #{mnist_vae_forward.5} parent=0
    _
  %s17 = ssub.s32 1, %s15
  %s18 = scalar_select 0, %s17, %s15
  $region1: #{mnist_vae_forward.5} parent=0
    #allocation2 [shape = 'u8[32768]{0}', space=vmem, size = 0x8000, scoped, tag = 'input window, operand 6, single buffered']
    #allocation3 [shape = 's32[1]{0}', space=sflag, size = 0x4, scoped, tag = 'scoped memory for mnist_vae_forward.5']
    %19 = vsyncpa [#allocation3], 0
    // Predicated region
    $region2: #{mnist_vae_forward.5} parent=1 // pred_check
      _
    $region3: #{mnist_vae_forward.5} parent=1 // pred_check_branch
      %21 = sbr.rel (0) target = $region5
    $region4: #{mnist_vae_forward.5} parent=1 // pred_region
      _
    $region5: #{mnist_vae_forward.5} parent=1 // pred_fallthru
      _
    // Predicated region
    $region6: #{mnist_vae_forward.5} parent=1 // pred_check
      _
    $region7: #{mnist_vae_forward.5} parent=1 // pred_check_branch
      %23 = sbr.rel (0) target = $region9
    $region8: #{mnist_vae_forward.5} parent=1 // pred_region
      _
    $region9: #{mnist_vae_forward.5} parent=1 // pred_fallthru
      _
    // Predicated region
    $region10: #{mnist_vae_forward.5} parent=1 // pred_check
      _
    $region11: #{mnist_vae_forward.5} parent=1 // pred_check_branch
      %25 = sbr.rel (0) target = $region13
    $region12: #{mnist_vae_forward.5} parent=1 // pred_region
      _
    $region13: #{mnist_vae_forward.5} parent=1 // pred_fallthru
      _
    // Predicated region
    $region14: #{mnist_vae_forward.5} parent=1 // pred_check
      _
    $region15: #{mnist_vae_forward.5} parent=1 // pred_check_branch
      %27 = sbr.rel (0) target = $region17
    $region16: #{mnist_vae_forward.5} parent=1 // pred_region
      _
    $region17: #{mnist_vae_forward.5} parent=1 // pred_fallthru
      _
    // Predicated region
    $region18: #{mnist_vae_forward.5} parent=1 // pred_check
      _
    $region19: #{mnist_vae_forward.5} parent=1 // pred_check_branch
      %29 = sbr.rel (0) target = $region21
    $region20: #{mnist_vae_forward.5} parent=1 // pred_region
      _
    $region21: #{mnist_vae_forward.5} parent=1 // pred_fallthru
      _
    // Predicated region
    $region22: #{mnist_vae_forward.5} parent=1 // pred_check
      _
    $region23: #{mnist_vae_forward.5} parent=1 // pred_check_branch
      %31 = sbr.rel (0) target = $region25
    $region24: #{mnist_vae_forward.5} parent=1 // pred_region
      _
    $region25: #{mnist_vae_forward.5} parent=1 // pred_fallthru
      _
    // Predicated region
    $region26: #{mnist_vae_forward.5} parent=1 // pred_check
      _
    $region27: #{mnist_vae_forward.5} parent=1 // pred_check_branch
      %33 = sbr.rel (0) target = $region29
    $region28: #{mnist_vae_forward.5} parent=1 // pred_region
      %s35 = ssub.s32 1024, 1024
      %36 = vsyncadd [#allocation3], %s35
      %s37 = sshll.u32 [#allocation2], 4
      %s38 = int_to_ptr.vmem [resolvable:$true] %s37
      %43 = dma.hbm_to_vmem [thread:$0]  %s6, 1024, %s38, [#allocation3], 64, 64, 4
    $region29: #{mnist_vae_forward.5} parent=1 // pred_fallthru
      _
    // Predicated region
    $region30: #{mnist_vae_forward.5} parent=1 // pred_check
      _
    $region31: #{mnist_vae_forward.5} parent=1 // pred_check_branch
      %45 = sbr.rel (0) target = $region33
    $region32: #{mnist_vae_forward.5} parent=1 // pred_region
      _
    $region33: #{mnist_vae_forward.5} parent=1 // pred_fallthru
      _
    // Predicated region
    $region34: #{mnist_vae_forward.5} parent=1 // pred_check
      _
    $region35: #{mnist_vae_forward.5} parent=1 // pred_check_branch
      %47 = sbr.rel (0) target = $region37
    $region36: #{mnist_vae_forward.5} parent=1 // pred_region
      _
    $region37: #{mnist_vae_forward.5} parent=1 // pred_fallthru
      _
    // Predicated region
    $region38: #{mnist_vae_forward.5} parent=1 // pred_check
      _
    $region39: #{mnist_vae_forward.5} parent=1 // pred_check_branch
      %49 = sbr.rel (0) target = $region41
    $region40: #{mnist_vae_forward.5} parent=1 // pred_region
      _
    $region41: #{mnist_vae_forward.5} parent=1 // pred_fallthru
      _
    // Predicated region
    $region42: #{mnist_vae_forward.5} parent=1 // pred_check
      _
    $region43: #{mnist_vae_forward.5} parent=1 // pred_check_branch
      %51 = sbr.rel (0) target = $region45
    $region44: #{mnist_vae_forward.5} parent=1 // pred_region
      _
    $region45: #{mnist_vae_forward.5} parent=1 // pred_fallthru
      _
    // Predicated region
    $region46: #{mnist_vae_forward.5} parent=1 // pred_check
      _
    $region47: #{mnist_vae_forward.5} parent=1 // pred_check_branch
      %53 = sbr.rel (0) target = $region49
    $region48: #{mnist_vae_forward.5} parent=1 // pred_region
      _
    $region49: #{mnist_vae_forward.5} parent=1 // pred_fallthru
      _
    // Predicated region
    $region50: #{mnist_vae_forward.5} parent=1 // pred_check
      _
    $region51: #{mnist_vae_forward.5} parent=1 // pred_check_branch
      %55 = sbr.rel (0) target = $region53
    $region52: #{mnist_vae_forward.5} parent=1 // pred_region
      %56 = dma.done [#allocation3], 1024
    $region53: #{mnist_vae_forward.5} parent=1 // pred_fallthru
      _
    %v58 = vld [vmem:[%s0] sm:$0xff]
    %v59 = vld [vmem:[%s1] sm:$0x1]
    %v61 = vlaneseq
    %v62 = vshrl.u32 %v61, 7
    %v63 = vsub.s32 0, %v62
    %v64 = vrot.slane %v59, %v63
    %v66 = vmul.f32 %v58, %v64
    %v67 = vld [vmem:[%s2] sm:$0x1]
    %v69 = vlaneseq
    %v70 = vshrl.u32 %v69, 7
    %v71 = vsub.s32 0, %v70
    %v72 = vrot.slane %v67, %v71
    %v74 = vadd.f32 %v66, %v72
    %v75 = vmax.f32 %v74, 0.0
    %v76 = vpack.c.bf16 %v75, %v75
    %v77 = vld [vmem:[%s4] sm:$0xff]
    %v78 = vld [vmem:[%s4 + $0x8] sm:$0xff]
    %v79 = vld [vmem:[%s4 + $0x10] sm:$0xff]
    %v80 = vld [vmem:[%s4 + $0x18] sm:$0xff]
    %v81 = vld [vmem:[%s4 + $0x20] sm:$0xff]
    %v82 = vld [vmem:[%s4 + $0x28] sm:$0xff]
    %v83 = vld [vmem:[%s4 + $0x30] sm:$0xff]
    %v84 = vld [vmem:[%s4 + $0x38] sm:$0xff]
    %v85 = vld [vmem:[%s4 + $0x40] sm:$0xff]
    %v86 = vld [vmem:[%s4 + $0x48] sm:$0xff]
    %v87 = vld [vmem:[%s4 + $0x50] sm:$0xff]
    %v88 = vld [vmem:[%s4 + $0x58] sm:$0xff]
    %v89 = vld [vmem:[%s4 + $0x60] sm:$0xff]
    %v90 = vld [vmem:[%s4 + $0x68] sm:$0xff]
    %v91 = vld [vmem:[%s4 + $0x70] sm:$0xff]
    %v92 = vld [vmem:[%s4 + $0x78] sm:$0xff]
    %v93 = vld [vmem:[%s5] sm:$0x3]
    %v95 = vlaneseq
    %v96 = vshrl.u32 %v95, 7
    %v97 = vsub.s32 0, %v96
    %v98 = vrot.slane %v93, %v97
    %v99 = vlaneseq
    %v100 = vshrl.u32 %v99, 7
    %v101 = vsub.s32 1, %v100
    %v102 = vrot.slane %v93, %v101
    %v121 = vunpack.c.l.b16 %v77
    %v122 = vunpack.c.h.b16 %v77
    %v123 = vunpack.c.l.b16 %v78
    %v124 = vunpack.c.h.b16 %v78
    %v125 = vunpack.c.l.b16 %v79
    %v126 = vunpack.c.h.b16 %v79
    %v127 = vunpack.c.l.b16 %v80
    %v128 = vunpack.c.h.b16 %v80
    %v129 = vunpack.c.l.b16 %v81
    %v130 = vunpack.c.h.b16 %v81
    %v131 = vunpack.c.l.b16 %v82
    %v132 = vunpack.c.h.b16 %v82
    %v133 = vunpack.c.l.b16 %v83
    %v134 = vunpack.c.h.b16 %v83
    %v135 = vunpack.c.l.b16 %v84
    %v136 = vunpack.c.h.b16 %v84
    %v137 = vunpack.c.l.b16 %v85
    %v138 = vunpack.c.h.b16 %v85
    %v139 = vunpack.c.l.b16 %v86
    %v140 = vunpack.c.h.b16 %v86
    %v141 = vunpack.c.l.b16 %v87
    %v142 = vunpack.c.h.b16 %v87
    %v143 = vunpack.c.l.b16 %v88
    %v144 = vunpack.c.h.b16 %v88
    %v145 = vunpack.c.l.b16 %v89
    %v146 = vunpack.c.h.b16 %v89
    %v147 = vunpack.c.l.b16 %v90
    %v148 = vunpack.c.h.b16 %v90
    %v149 = vunpack.c.l.b16 %v91
    %v150 = vunpack.c.h.b16 %v91
    %v151 = vunpack.c.l.b16 %v92
    %v152 = vunpack.c.h.b16 %v92
    %v153 = vpack.c.b16 %v123, %v121
    %v154 = vpack.c.b16 %v124, %v122
    %v155 = vpack.c.b16 %v127, %v125
    %v156 = vpack.c.b16 %v128, %v126
    %v157 = vpack.c.b16 %v131, %v129
    %v158 = vpack.c.b16 %v132, %v130
    %v159 = vpack.c.b16 %v135, %v133
    %v160 = vpack.c.b16 %v136, %v134
    %v161 = vpack.c.b16 %v139, %v137
    %v162 = vpack.c.b16 %v140, %v138
    %v163 = vpack.c.b16 %v143, %v141
    %v164 = vpack.c.b16 %v144, %v142
    %v165 = vpack.c.b16 %v147, %v145
    %v166 = vpack.c.b16 %v148, %v146
    %v167 = vpack.c.b16 %v151, %v149
    %v168 = vpack.c.b16 %v152, %v150
    %185 = vmatprep.subr.bf16.mxu0 %v168
    %186 = vmatpush1.bf16.msra.mxu0 %v167
    %187 = vmatprep.subr.bf16.mxu0 %v166
    %188 = vmatpush1.bf16.msra.mxu0 %v165
    %189 = vmatprep.subr.bf16.mxu0 %v164
    %190 = vmatpush1.bf16.msra.mxu0 %v163
    %191 = vmatprep.subr.bf16.mxu0 %v162
    %192 = vmatpush1.bf16.msra.mxu0 %v161
    %193 = vmatprep.subr.bf16.mxu0 %v160
    %194 = vmatpush1.bf16.msra.mxu0 %v159
    %195 = vmatprep.subr.bf16.mxu0 %v158
    %196 = vmatpush1.bf16.msra.mxu0 %v157
    %197 = vmatprep.subr.bf16.mxu0 %v156
    %198 = vmatpush1.bf16.msra.mxu0 %v155
    %199 = vmatprep.subr.bf16.mxu0 %v154
    %200 = vmatpush1.bf16.msra.mxu0 %v153
    %201 = vmatprep.subr.bf16.mxu0 0
    %202 = vmatpush2.bf16.msra.mxu0 0
    %203 = vmatprep.subr.bf16.mxu0 0
    %204 = vmatpush2.bf16.msra.mxu0 0
    %205 = vmatprep.subr.bf16.mxu0 0
    %206 = vmatpush2.bf16.msra.mxu0 0
    %207 = vmatprep.subr.bf16.mxu0 0
    %208 = vmatpush2.bf16.msra.mxu0 0
    %209 = vmatprep.subr.bf16.mxu0 0
    %210 = vmatpush2.bf16.msra.mxu0 0
    %211 = vmatprep.subr.bf16.mxu0 0
    %212 = vmatpush2.bf16.msra.mxu0 0
    %213 = vmatprep.subr.bf16.mxu0 0
    %214 = vmatpush2.bf16.msra.mxu0 0
    %215 = vmatprep.subr.bf16.mxu0 0
    %216 = vmatpush2.bf16.msra.mxu0 0
    %217 = vmatprep.mubr.bf16.mxu0 0
    %218 = vmatmul.mubr.bf16.gmra.mxu0 %v76
    %v219 = vpop.f32.mrf.mxu0
    %v220 = vadd.f32 %v98, %v219
    %v221 = vpop.f32.mrf.mxu0
    %v222 = vadd.f32 %v102, %v221
    %v223 = vpop.f32.mrf.mxu0
    %v224 = vpop.f32.mrf.mxu0
    %225 = vdwg.mxu0
    %v226 = vmul.f32 %v222, 0.5
    %v227 = vmul.f32 %v226, 1.442695
    %v228 = vpow.pop %v227
    %v229 = vld [vmem:[%s3] sm:$0xff]
    %v230 = vmul.f32 %v229, %v228
    %v231 = vadd.f32 %v230, %v220
    %v232 = vpack.c.bf16 %v231, %v231
    %v233 = vld [vmem:[#allocation2] sm:$0xf]
    %v234 = vld [vmem:[#allocation2 + $0x4] sm:$0xf]
    %v235 = vld [vmem:[#allocation2 + $0x8] sm:$0xf]
    %v236 = vld [vmem:[#allocation2 + $0xc] sm:$0xf]
    %v237 = vld [vmem:[#allocation2 + $0x10] sm:$0xf]
    %v238 = vld [vmem:[#allocation2 + $0x14] sm:$0xf]
    %v239 = vld [vmem:[#allocation2 + $0x18] sm:$0xf]
    %v240 = vld [vmem:[#allocation2 + $0x1c] sm:$0xf]
    %v241 = vld [vmem:[#allocation2 + $0x20] sm:$0xf]
    %v242 = vld [vmem:[#allocation2 + $0x24] sm:$0xf]
    %v243 = vld [vmem:[#allocation2 + $0x28] sm:$0xf]
    %v244 = vld [vmem:[#allocation2 + $0x2c] sm:$0xf]
    %v245 = vld [vmem:[#allocation2 + $0x30] sm:$0xf]
    %v246 = vld [vmem:[#allocation2 + $0x34] sm:$0xf]
    %v247 = vld [vmem:[#allocation2 + $0x38] sm:$0xf]
    %v248 = vld [vmem:[#allocation2 + $0x3c] sm:$0xf]
    %v249 = vld [vmem:[%s7] sm:$0x1]
    %v251 = vlaneseq
    %v252 = vshrl.u32 %v251, 7
    %v253 = vsub.s32 0, %v252
    %v254 = vrot.slane %v249, %v253
    %v272 = vunpack.c.l.b16 %v233
    %v273 = vunpack.c.l.b16 %v234
    %v274 = vunpack.c.l.b16 %v235
    %v275 = vunpack.c.l.b16 %v236
    %v276 = vunpack.c.l.b16 %v237
    %v277 = vunpack.c.l.b16 %v238
    %v278 = vunpack.c.l.b16 %v239
    %v279 = vunpack.c.l.b16 %v240
    %v280 = vunpack.c.l.b16 %v241
    %v281 = vunpack.c.l.b16 %v242
    %v282 = vunpack.c.l.b16 %v243
    %v283 = vunpack.c.l.b16 %v244
    %v284 = vunpack.c.l.b16 %v245
    %v285 = vunpack.c.l.b16 %v246
    %v286 = vunpack.c.l.b16 %v247
    %v287 = vunpack.c.l.b16 %v248
    %v288 = vpack.c.b16 %v273, %v272
    %v289 = vpack.c.b16 %v275, %v274
    %v290 = vpack.c.b16 %v277, %v276
    %v291 = vpack.c.b16 %v279, %v278
    %v292 = vpack.c.b16 %v281, %v280
    %v293 = vpack.c.b16 %v283, %v282
    %v294 = vpack.c.b16 %v285, %v284
    %v295 = vpack.c.b16 %v287, %v286
    %304 = vmatprep.subr.bf16.mxu0 0
    %305 = vmatpush1.bf16.msra.mxu0 %v295
    %306 = vmatprep.subr.bf16.mxu0 0
    %307 = vmatpush1.bf16.msra.mxu0 %v294
    %308 = vmatprep.subr.bf16.mxu0 0
    %309 = vmatpush1.bf16.msra.mxu0 %v293
    %310 = vmatprep.subr.bf16.mxu0 0
    %311 = vmatpush1.bf16.msra.mxu0 %v292
    %312 = vmatprep.subr.bf16.mxu0 0
    %313 = vmatpush1.bf16.msra.mxu0 %v291
    %314 = vmatprep.subr.bf16.mxu0 0
    %315 = vmatpush1.bf16.msra.mxu0 %v290
    %316 = vmatprep.subr.bf16.mxu0 0
    %317 = vmatpush1.bf16.msra.mxu0 %v289
    %318 = vmatprep.subr.bf16.mxu0 0
    %319 = vmatpush1.bf16.msra.mxu0 %v288
    %320 = vmatprep.subr.bf16.mxu0 0
    %321 = vmatpush2.bf16.msra.mxu0 0
    %322 = vmatprep.subr.bf16.mxu0 0
    %323 = vmatpush2.bf16.msra.mxu0 0
    %324 = vmatprep.subr.bf16.mxu0 0
    %325 = vmatpush2.bf16.msra.mxu0 0
    %326 = vmatprep.subr.bf16.mxu0 0
    %327 = vmatpush2.bf16.msra.mxu0 0
    %328 = vmatprep.subr.bf16.mxu0 0
    %329 = vmatpush2.bf16.msra.mxu0 0
    %330 = vmatprep.subr.bf16.mxu0 0
    %331 = vmatpush2.bf16.msra.mxu0 0
    %332 = vmatprep.subr.bf16.mxu0 0
    %333 = vmatpush2.bf16.msra.mxu0 0
    %334 = vmatprep.subr.bf16.mxu0 0
    %335 = vmatpush2.bf16.msra.mxu0 0
    %336 = vmatprep.mubr.bf16.mxu0 0
    %337 = vmatmul.mubr.bf16.gmra.mxu0 %v232
    %v338 = vpop.f32.mrf.mxu0
    %v339 = vadd.f32 %v254, %v338
    %v340 = vpop.f32.mrf.mxu0
    %v341 = vpop.f32.mrf.mxu0
    %v342 = vpop.f32.mrf.mxu0
    %343 = vdwg.mxu0
    %v344 = vmax.f32 %v339, 0.0
    %v345 = vpack.c.bf16 %v344, %v344
    %v346 = vld [vmem:[%s8] sm:$0xff]
    %v347 = vld [vmem:[%s8 + $0x8] sm:$0xff]
    %v348 = vld [vmem:[%s8 + $0x10] sm:$0xff]
    %v349 = vld [vmem:[%s8 + $0x18] sm:$0xff]
    %v350 = vld [vmem:[%s8 + $0x20] sm:$0xff]
    %v351 = vld [vmem:[%s8 + $0x28] sm:$0xff]
    %v352 = vld [vmem:[%s8 + $0x30] sm:$0xff]
    %v353 = vld [vmem:[%s8 + $0x38] sm:$0xff]
    %v354 = vld [vmem:[%s8 + $0x40] sm:$0xff]
    %v355 = vld [vmem:[%s8 + $0x48] sm:$0xff]
    %v356 = vld [vmem:[%s8 + $0x50] sm:$0xff]
    %v357 = vld [vmem:[%s8 + $0x58] sm:$0xff]
    %v358 = vld [vmem:[%s8 + $0x60] sm:$0xff]
    %v359 = vld [vmem:[%s8 + $0x68] sm:$0xff]
    %v360 = vld [vmem:[%s8 + $0x70] sm:$0xff]
    %v361 = vld [vmem:[%s8 + $0x78] sm:$0xff]
    %v362 = vld [vmem:[%s9] sm:$0x3]
    %v364 = vlaneseq
    %v365 = vshrl.u32 %v364, 7
    %v366 = vsub.s32 0, %v365
    %v367 = vrot.slane %v362, %v366
    %v368 = vlaneseq
    %v369 = vshrl.u32 %v368, 7
    %v370 = vsub.s32 1, %v369
    %v371 = vrot.slane %v362, %v370
    %v390 = vunpack.c.l.b16 %v346
    %v391 = vunpack.c.h.b16 %v346
    %v392 = vunpack.c.l.b16 %v347
    %v393 = vunpack.c.h.b16 %v347
    %v394 = vunpack.c.l.b16 %v348
    %v395 = vunpack.c.h.b16 %v348
    %v396 = vunpack.c.l.b16 %v349
    %v397 = vunpack.c.h.b16 %v349
    %v398 = vunpack.c.l.b16 %v350
    %v399 = vunpack.c.h.b16 %v350
    %v400 = vunpack.c.l.b16 %v351
    %v401 = vunpack.c.h.b16 %v351
    %v402 = vunpack.c.l.b16 %v352
    %v403 = vunpack.c.h.b16 %v352
    %v404 = vunpack.c.l.b16 %v353
    %v405 = vunpack.c.h.b16 %v353
    %v406 = vunpack.c.l.b16 %v354
    %v407 = vunpack.c.h.b16 %v354
    %v408 = vunpack.c.l.b16 %v355
    %v409 = vunpack.c.h.b16 %v355
    %v410 = vunpack.c.l.b16 %v356
    %v411 = vunpack.c.h.b16 %v356
    %v412 = vunpack.c.l.b16 %v357
    %v413 = vunpack.c.h.b16 %v357
    %v414 = vunpack.c.l.b16 %v358
    %v415 = vunpack.c.h.b16 %v358
    %v416 = vunpack.c.l.b16 %v359
    %v417 = vunpack.c.h.b16 %v359
    %v418 = vunpack.c.l.b16 %v360
    %v419 = vunpack.c.h.b16 %v360
    %v420 = vunpack.c.l.b16 %v361
    %v421 = vunpack.c.h.b16 %v361
    %v422 = vpack.c.b16 %v392, %v390
    %v423 = vpack.c.b16 %v393, %v391
    %v424 = vpack.c.b16 %v396, %v394
    %v425 = vpack.c.b16 %v397, %v395
    %v426 = vpack.c.b16 %v400, %v398
    %v427 = vpack.c.b16 %v401, %v399
    %v428 = vpack.c.b16 %v404, %v402
    %v429 = vpack.c.b16 %v405, %v403
    %v430 = vpack.c.b16 %v408, %v406
    %v431 = vpack.c.b16 %v409, %v407
    %v432 = vpack.c.b16 %v412, %v410
    %v433 = vpack.c.b16 %v413, %v411
    %v434 = vpack.c.b16 %v416, %v414
    %v435 = vpack.c.b16 %v417, %v415
    %v436 = vpack.c.b16 %v420, %v418
    %v437 = vpack.c.b16 %v421, %v419
    %454 = vmatprep.subr.bf16.mxu0 %v437
    %455 = vmatpush1.bf16.msra.mxu0 %v436
    %456 = vmatprep.subr.bf16.mxu0 %v435
    %457 = vmatpush1.bf16.msra.mxu0 %v434
    %458 = vmatprep.subr.bf16.mxu0 %v433
    %459 = vmatpush1.bf16.msra.mxu0 %v432
    %460 = vmatprep.subr.bf16.mxu0 %v431
    %461 = vmatpush1.bf16.msra.mxu0 %v430
    %462 = vmatprep.subr.bf16.mxu0 %v429
    %463 = vmatpush1.bf16.msra.mxu0 %v428
    %464 = vmatprep.subr.bf16.mxu0 %v427
    %465 = vmatpush1.bf16.msra.mxu0 %v426
    %466 = vmatprep.subr.bf16.mxu0 %v425
    %467 = vmatpush1.bf16.msra.mxu0 %v424
    %468 = vmatprep.subr.bf16.mxu0 %v423
    %469 = vmatpush1.bf16.msra.mxu0 %v422
    %470 = vmatprep.subr.bf16.mxu0 0
    %471 = vmatpush2.bf16.msra.mxu0 0
    %472 = vmatprep.subr.bf16.mxu0 0
    %473 = vmatpush2.bf16.msra.mxu0 0
    %474 = vmatprep.subr.bf16.mxu0 0
    %475 = vmatpush2.bf16.msra.mxu0 0
    %476 = vmatprep.subr.bf16.mxu0 0
    %477 = vmatpush2.bf16.msra.mxu0 0
    %478 = vmatprep.subr.bf16.mxu0 0
    %479 = vmatpush2.bf16.msra.mxu0 0
    %480 = vmatprep.subr.bf16.mxu0 0
    %481 = vmatpush2.bf16.msra.mxu0 0
    %482 = vmatprep.subr.bf16.mxu0 0
    %483 = vmatpush2.bf16.msra.mxu0 0
    %484 = vmatprep.subr.bf16.mxu0 0
    %485 = vmatpush2.bf16.msra.mxu0 0
    %486 = vmatprep.mubr.bf16.mxu0 0
    %487 = vmatmul.mubr.bf16.gmra.mxu0 %v345
    %v488 = vpop.f32.mrf.mxu0
    %v489 = vadd.f32 %v367, %v488
    %v490 = vpop.f32.mrf.mxu0
    %v491 = vadd.f32 %v371, %v490
    %v492 = vpop.f32.mrf.mxu0
    %v493 = vpop.f32.mrf.mxu0
    %494 = vdwg.mxu0
    %v495 = vmax.f32 %v489, 0.0
    %v496 = vmax.f32 %v491, 0.0
    %v497 = vpack.c.bf16 %v495, %v495
    %v498 = vpack.c.bf16 %v496, %v496
    %v499 = vld [vmem:[%s10] sm:$0xff]
    %v500 = vld [vmem:[%s10 + $0x8] sm:$0xff]
    %v501 = vld [vmem:[%s10 + $0x10] sm:$0xff]
    %v502 = vld [vmem:[%s10 + $0x18] sm:$0xf]
    %v503 = vld [vmem:[%s10 + $0x1c] sm:$0xff]
    %v504 = vld [vmem:[%s10 + $0x24] sm:$0xff]
    %v505 = vld [vmem:[%s10 + $0x2c] sm:$0xff]
    %v506 = vld [vmem:[%s10 + $0x34] sm:$0xf]
    %v507 = vld [vmem:[%s10 + $0x38] sm:$0xff]
    %v508 = vld [vmem:[%s10 + $0x40] sm:$0xff]
    %v509 = vld [vmem:[%s10 + $0x48] sm:$0xff]
    %v510 = vld [vmem:[%s10 + $0x50] sm:$0xf]
    %v511 = vld [vmem:[%s10 + $0x54] sm:$0xff]
    %v512 = vld [vmem:[%s10 + $0x5c] sm:$0xff]
    %v513 = vld [vmem:[%s10 + $0x64] sm:$0xff]
    %v514 = vld [vmem:[%s10 + $0x6c] sm:$0xf]
    %v515 = vld [vmem:[%s10 + $0x70] sm:$0xff]
    %v516 = vld [vmem:[%s10 + $0x78] sm:$0xff]
    %v517 = vld [vmem:[%s10 + $0x80] sm:$0xff]
    %v518 = vld [vmem:[%s10 + $0x88] sm:$0xf]
    %v519 = vld [vmem:[%s10 + $0x8c] sm:$0xff]
    %v520 = vld [vmem:[%s10 + $0x94] sm:$0xff]
    %v521 = vld [vmem:[%s10 + $0x9c] sm:$0xff]
    %v522 = vld [vmem:[%s10 + $0xa4] sm:$0xf]
    %v523 = vld [vmem:[%s10 + $0xa8] sm:$0xff]
    %v524 = vld [vmem:[%s10 + $0xb0] sm:$0xff]
    %v525 = vld [vmem:[%s10 + $0xb8] sm:$0xff]
    %v526 = vld [vmem:[%s10 + $0xc0] sm:$0xf]
    %v527 = vld [vmem:[%s10 + $0xc4] sm:$0xff]
    %v528 = vld [vmem:[%s10 + $0xcc] sm:$0xff]
    %v529 = vld [vmem:[%s10 + $0xd4] sm:$0xff]
    %v530 = vld [vmem:[%s10 + $0xdc] sm:$0xf]
    %v531 = vld [vmem:[%s10 + $0xe0] sm:$0xff]
    %v532 = vld [vmem:[%s10 + $0xe8] sm:$0xff]
    %v533 = vld [vmem:[%s10 + $0xf0] sm:$0xff]
    %v534 = vld [vmem:[%s10 + $0xf8] sm:$0xf]
    %v535 = vld [vmem:[%s10 + $0xfc] sm:$0xff]
    %v536 = vld [vmem:[%s10 + $0x104] sm:$0xff]
    %v537 = vld [vmem:[%s10 + $0x10c] sm:$0xff]
    %v538 = vld [vmem:[%s10 + $0x114] sm:$0xf]
    %v539 = vld [vmem:[%s10 + $0x118] sm:$0xff]
    %v540 = vld [vmem:[%s10 + $0x120] sm:$0xff]
    %v541 = vld [vmem:[%s10 + $0x128] sm:$0xff]
    %v542 = vld [vmem:[%s10 + $0x130] sm:$0xf]
    %v543 = vld [vmem:[%s10 + $0x134] sm:$0xff]
    %v544 = vld [vmem:[%s10 + $0x13c] sm:$0xff]
    %v545 = vld [vmem:[%s10 + $0x144] sm:$0xff]
    %v546 = vld [vmem:[%s10 + $0x14c] sm:$0xf]
    %v547 = vld [vmem:[%s10 + $0x150] sm:$0xff]
    %v548 = vld [vmem:[%s10 + $0x158] sm:$0xff]
    %v549 = vld [vmem:[%s10 + $0x160] sm:$0xff]
    %v550 = vld [vmem:[%s10 + $0x168] sm:$0xf]
    %v551 = vld [vmem:[%s10 + $0x16c] sm:$0xff]
    %v552 = vld [vmem:[%s10 + $0x174] sm:$0xff]
    %v553 = vld [vmem:[%s10 + $0x17c] sm:$0xff]
    %v554 = vld [vmem:[%s10 + $0x184] sm:$0xf]
    %v555 = vld [vmem:[%s10 + $0x188] sm:$0xff]
    %v556 = vld [vmem:[%s10 + $0x190] sm:$0xff]
    %v557 = vld [vmem:[%s10 + $0x198] sm:$0xff]
    %v558 = vld [vmem:[%s10 + $0x1a0] sm:$0xf]
    %v559 = vld [vmem:[%s10 + $0x1a4] sm:$0xff]
    %v560 = vld [vmem:[%s10 + $0x1ac] sm:$0xff]
    %v561 = vld [vmem:[%s10 + $0x1b4] sm:$0xff]
    %v562 = vld [vmem:[%s10 + $0x1bc] sm:$0xf]
    %v563 = vld [vmem:[%s10 + $0x1c0] sm:$0xff]
    %v564 = vld [vmem:[%s10 + $0x1c8] sm:$0xff]
    %v565 = vld [vmem:[%s10 + $0x1d0] sm:$0xff]
    %v566 = vld [vmem:[%s10 + $0x1d8] sm:$0xf]
    %v567 = vld [vmem:[%s10 + $0x1dc] sm:$0xff]
    %v568 = vld [vmem:[%s10 + $0x1e4] sm:$0xff]
    %v569 = vld [vmem:[%s10 + $0x1ec] sm:$0xff]
    %v570 = vld [vmem:[%s10 + $0x1f4] sm:$0xf]
    %v571 = vld [vmem:[%s10 + $0x1f8] sm:$0xff]
    %v572 = vld [vmem:[%s10 + $0x200] sm:$0xff]
    %v573 = vld [vmem:[%s10 + $0x208] sm:$0xff]
    %v574 = vld [vmem:[%s10 + $0x210] sm:$0xf]
    %v575 = vld [vmem:[%s10 + $0x214] sm:$0xff]
    %v576 = vld [vmem:[%s10 + $0x21c] sm:$0xff]
    %v577 = vld [vmem:[%s10 + $0x224] sm:$0xff]
    %v578 = vld [vmem:[%s10 + $0x22c] sm:$0xf]
    %v579 = vld [vmem:[%s10 + $0x230] sm:$0xff]
    %v580 = vld [vmem:[%s10 + $0x238] sm:$0xff]
    %v581 = vld [vmem:[%s10 + $0x240] sm:$0xff]
    %v582 = vld [vmem:[%s10 + $0x248] sm:$0xf]
    %v583 = vld [vmem:[%s10 + $0x24c] sm:$0xff]
    %v584 = vld [vmem:[%s10 + $0x254] sm:$0xff]
    %v585 = vld [vmem:[%s10 + $0x25c] sm:$0xff]
    %v586 = vld [vmem:[%s10 + $0x264] sm:$0xf]
    %v587 = vld [vmem:[%s10 + $0x268] sm:$0xff]
    %v588 = vld [vmem:[%s10 + $0x270] sm:$0xff]
    %v589 = vld [vmem:[%s10 + $0x278] sm:$0xff]
    %v590 = vld [vmem:[%s10 + $0x280] sm:$0xf]
    %v591 = vld [vmem:[%s10 + $0x284] sm:$0xff]
    %v592 = vld [vmem:[%s10 + $0x28c] sm:$0xff]
    %v593 = vld [vmem:[%s10 + $0x294] sm:$0xff]
    %v594 = vld [vmem:[%s10 + $0x29c] sm:$0xf]
    %v595 = vld [vmem:[%s10 + $0x2a0] sm:$0xff]
    %v596 = vld [vmem:[%s10 + $0x2a8] sm:$0xff]
    %v597 = vld [vmem:[%s10 + $0x2b0] sm:$0xff]
    %v598 = vld [vmem:[%s10 + $0x2b8] sm:$0xf]
    %v599 = vld [vmem:[%s10 + $0x2bc] sm:$0xff]
    %v600 = vld [vmem:[%s10 + $0x2c4] sm:$0xff]
    %v601 = vld [vmem:[%s10 + $0x2cc] sm:$0xff]
    %v602 = vld [vmem:[%s10 + $0x2d4] sm:$0xf]
    %v603 = vld [vmem:[%s10 + $0x2d8] sm:$0xff]
    %v604 = vld [vmem:[%s10 + $0x2e0] sm:$0xff]
    %v605 = vld [vmem:[%s10 + $0x2e8] sm:$0xff]
    %v606 = vld [vmem:[%s10 + $0x2f0] sm:$0xf]
    %v607 = vld [vmem:[%s10 + $0x2f4] sm:$0xff]
    %v608 = vld [vmem:[%s10 + $0x2fc] sm:$0xff]
    %v609 = vld [vmem:[%s10 + $0x304] sm:$0xff]
    %v610 = vld [vmem:[%s10 + $0x30c] sm:$0xf]
    %v611 = vld [vmem:[%s10 + $0x310] sm:$0xff]
    %v612 = vld [vmem:[%s10 + $0x318] sm:$0xff]
    %v613 = vld [vmem:[%s10 + $0x320] sm:$0xff]
    %v614 = vld [vmem:[%s10 + $0x328] sm:$0xf]
    %v615 = vld [vmem:[%s10 + $0x32c] sm:$0xff]
    %v616 = vld [vmem:[%s10 + $0x334] sm:$0xff]
    %v617 = vld [vmem:[%s10 + $0x33c] sm:$0xff]
    %v618 = vld [vmem:[%s10 + $0x344] sm:$0xf]
    %v619 = vld [vmem:[%s10 + $0x348] sm:$0xff]
    %v620 = vld [vmem:[%s10 + $0x350] sm:$0xff]
    %v621 = vld [vmem:[%s10 + $0x358] sm:$0xff]
    %v622 = vld [vmem:[%s10 + $0x360] sm:$0xf]
    %v623 = vld [vmem:[%s10 + $0x364] sm:$0xff]
    %v624 = vld [vmem:[%s10 + $0x36c] sm:$0xff]
    %v625 = vld [vmem:[%s10 + $0x374] sm:$0xff]
    %v626 = vld [vmem:[%s10 + $0x37c] sm:$0xf]
    %v627 = vld [vmem:[%s11] sm:$0xff]
    %v629 = vlaneseq
    %v630 = vshrl.u32 %v629, 7
    %v631 = vsub.s32 0, %v630
    %v632 = vrot.slane %v627, %v631
    %v633 = vlaneseq
    %v634 = vshrl.u32 %v633, 7
    %v635 = vsub.s32 1, %v634
    %v636 = vrot.slane %v627, %v635
    %v637 = vlaneseq
    %v638 = vshrl.u32 %v637, 7
    %v639 = vsub.s32 2, %v638
    %v640 = vrot.slane %v627, %v639
    %v641 = vlaneseq
    %v642 = vshrl.u32 %v641, 7
    %v643 = vsub.s32 3, %v642
    %v644 = vrot.slane %v627, %v643
    %v645 = vlaneseq
    %v646 = vshrl.u32 %v645, 7
    %v647 = vsub.s32 4, %v646
    %v648 = vrot.slane %v627, %v647
    %v649 = vlaneseq
    %v650 = vshrl.u32 %v649, 7
    %v651 = vsub.s32 5, %v650
    %v652 = vrot.slane %v627, %v651
    %v653 = vlaneseq
    %v654 = vshrl.u32 %v653, 7
    %v655 = vsub.s32 6, %v654
    %v656 = vrot.slane %v627, %v655
    %v792 = vunpack.c.l.b16 %v499
    %v793 = vunpack.c.h.b16 %v499
    %v794 = vunpack.c.l.b16 %v500
    %v795 = vunpack.c.h.b16 %v500
    %v796 = vunpack.c.l.b16 %v501
    %v797 = vunpack.c.h.b16 %v501
    %v798 = vunpack.c.l.b16 %v502
    %v799 = vunpack.c.l.b16 %v503
    %v800 = vunpack.c.h.b16 %v503
    %v801 = vunpack.c.l.b16 %v504
    %v802 = vunpack.c.h.b16 %v504
    %v803 = vunpack.c.l.b16 %v505
    %v804 = vunpack.c.h.b16 %v505
    %v805 = vunpack.c.l.b16 %v506
    %v806 = vunpack.c.l.b16 %v507
    %v807 = vunpack.c.h.b16 %v507
    %v808 = vunpack.c.l.b16 %v508
    %v809 = vunpack.c.h.b16 %v508
    %v810 = vunpack.c.l.b16 %v509
    %v811 = vunpack.c.h.b16 %v509
    %v812 = vunpack.c.l.b16 %v510
    %v813 = vunpack.c.l.b16 %v511
    %v814 = vunpack.c.h.b16 %v511
    %v815 = vunpack.c.l.b16 %v512
    %v816 = vunpack.c.h.b16 %v512
    %v817 = vunpack.c.l.b16 %v513
    %v818 = vunpack.c.h.b16 %v513
    %v819 = vunpack.c.l.b16 %v514
    %v820 = vunpack.c.l.b16 %v515
    %v821 = vunpack.c.h.b16 %v515
    %v822 = vunpack.c.l.b16 %v516
    %v823 = vunpack.c.h.b16 %v516
    %v824 = vunpack.c.l.b16 %v517
    %v825 = vunpack.c.h.b16 %v517
    %v826 = vunpack.c.l.b16 %v518
    %v827 = vunpack.c.l.b16 %v519
    %v828 = vunpack.c.h.b16 %v519
    %v829 = vunpack.c.l.b16 %v520
    %v830 = vunpack.c.h.b16 %v520
    %v831 = vunpack.c.l.b16 %v521
    %v832 = vunpack.c.h.b16 %v521
    %v833 = vunpack.c.l.b16 %v522
    %v834 = vunpack.c.l.b16 %v523
    %v835 = vunpack.c.h.b16 %v523
    %v836 = vunpack.c.l.b16 %v524
    %v837 = vunpack.c.h.b16 %v524
    %v838 = vunpack.c.l.b16 %v525
    %v839 = vunpack.c.h.b16 %v525
    %v840 = vunpack.c.l.b16 %v526
    %v841 = vunpack.c.l.b16 %v527
    %v842 = vunpack.c.h.b16 %v527
    %v843 = vunpack.c.l.b16 %v528
    %v844 = vunpack.c.h.b16 %v528
    %v845 = vunpack.c.l.b16 %v529
    %v846 = vunpack.c.h.b16 %v529
    %v847 = vunpack.c.l.b16 %v530
    %v848 = vunpack.c.l.b16 %v531
    %v849 = vunpack.c.h.b16 %v531
    %v850 = vunpack.c.l.b16 %v532
    %v851 = vunpack.c.h.b16 %v532
    %v852 = vunpack.c.l.b16 %v533
    %v853 = vunpack.c.h.b16 %v533
    %v854 = vunpack.c.l.b16 %v534
    %v855 = vunpack.c.l.b16 %v535
    %v856 = vunpack.c.h.b16 %v535
    %v857 = vunpack.c.l.b16 %v536
    %v858 = vunpack.c.h.b16 %v536
    %v859 = vunpack.c.l.b16 %v537
    %v860 = vunpack.c.h.b16 %v537
    %v861 = vunpack.c.l.b16 %v538
    %v862 = vunpack.c.l.b16 %v539
    %v863 = vunpack.c.h.b16 %v539
    %v864 = vunpack.c.l.b16 %v540
    %v865 = vunpack.c.h.b16 %v540
    %v866 = vunpack.c.l.b16 %v541
    %v867 = vunpack.c.h.b16 %v541
    %v868 = vunpack.c.l.b16 %v542
    %v869 = vunpack.c.l.b16 %v543
    %v870 = vunpack.c.h.b16 %v543
    %v871 = vunpack.c.l.b16 %v544
    %v872 = vunpack.c.h.b16 %v544
    %v873 = vunpack.c.l.b16 %v545
    %v874 = vunpack.c.h.b16 %v545
    %v875 = vunpack.c.l.b16 %v546
    %v876 = vunpack.c.l.b16 %v547
    %v877 = vunpack.c.h.b16 %v547
    %v878 = vunpack.c.l.b16 %v548
    %v879 = vunpack.c.h.b16 %v548
    %v880 = vunpack.c.l.b16 %v549
    %v881 = vunpack.c.h.b16 %v549
    %v882 = vunpack.c.l.b16 %v550
    %v883 = vunpack.c.l.b16 %v551
    %v884 = vunpack.c.h.b16 %v551
    %v885 = vunpack.c.l.b16 %v552
    %v886 = vunpack.c.h.b16 %v552
    %v887 = vunpack.c.l.b16 %v553
    %v888 = vunpack.c.h.b16 %v553
    %v889 = vunpack.c.l.b16 %v554
    %v890 = vunpack.c.l.b16 %v555
    %v891 = vunpack.c.h.b16 %v555
    %v892 = vunpack.c.l.b16 %v556
    %v893 = vunpack.c.h.b16 %v556
    %v894 = vunpack.c.l.b16 %v557
    %v895 = vunpack.c.h.b16 %v557
    %v896 = vunpack.c.l.b16 %v558
    %v897 = vunpack.c.l.b16 %v559
    %v898 = vunpack.c.h.b16 %v559
    %v899 = vunpack.c.l.b16 %v560
    %v900 = vunpack.c.h.b16 %v560
    %v901 = vunpack.c.l.b16 %v561
    %v902 = vunpack.c.h.b16 %v561
    %v903 = vunpack.c.l.b16 %v562
    %v904 = vunpack.c.l.b16 %v563
    %v905 = vunpack.c.h.b16 %v563
    %v906 = vunpack.c.l.b16 %v564
    %v907 = vunpack.c.h.b16 %v564
    %v908 = vunpack.c.l.b16 %v565
    %v909 = vunpack.c.h.b16 %v565
    %v910 = vunpack.c.l.b16 %v566
    %v911 = vunpack.c.l.b16 %v567
    %v912 = vunpack.c.h.b16 %v567
    %v913 = vunpack.c.l.b16 %v568
    %v914 = vunpack.c.h.b16 %v568
    %v915 = vunpack.c.l.b16 %v569
    %v916 = vunpack.c.h.b16 %v569
    %v917 = vunpack.c.l.b16 %v570
    %v918 = vunpack.c.l.b16 %v571
    %v919 = vunpack.c.h.b16 %v571
    %v920 = vunpack.c.l.b16 %v572
    %v921 = vunpack.c.h.b16 %v572
    %v922 = vunpack.c.l.b16 %v573
    %v923 = vunpack.c.h.b16 %v573
    %v924 = vunpack.c.l.b16 %v574
    %v925 = vunpack.c.l.b16 %v575
    %v926 = vunpack.c.h.b16 %v575
    %v927 = vunpack.c.l.b16 %v576
    %v928 = vunpack.c.h.b16 %v576
    %v929 = vunpack.c.l.b16 %v577
    %v930 = vunpack.c.h.b16 %v577
    %v931 = vunpack.c.l.b16 %v578
    %v932 = vunpack.c.l.b16 %v579
    %v933 = vunpack.c.h.b16 %v579
    %v934 = vunpack.c.l.b16 %v580
    %v935 = vunpack.c.h.b16 %v580
    %v936 = vunpack.c.l.b16 %v581
    %v937 = vunpack.c.h.b16 %v581
    %v938 = vunpack.c.l.b16 %v582
    %v939 = vunpack.c.l.b16 %v583
    %v940 = vunpack.c.h.b16 %v583
    %v941 = vunpack.c.l.b16 %v584
    %v942 = vunpack.c.h.b16 %v584
    %v943 = vunpack.c.l.b16 %v585
    %v944 = vunpack.c.h.b16 %v585
    %v945 = vunpack.c.l.b16 %v586
    %v946 = vunpack.c.l.b16 %v587
    %v947 = vunpack.c.h.b16 %v587
    %v948 = vunpack.c.l.b16 %v588
    %v949 = vunpack.c.h.b16 %v588
    %v950 = vunpack.c.l.b16 %v589
    %v951 = vunpack.c.h.b16 %v589
    %v952 = vunpack.c.l.b16 %v590
    %v953 = vunpack.c.l.b16 %v591
    %v954 = vunpack.c.h.b16 %v591
    %v955 = vunpack.c.l.b16 %v592
    %v956 = vunpack.c.h.b16 %v592
    %v957 = vunpack.c.l.b16 %v593
    %v958 = vunpack.c.h.b16 %v593
    %v959 = vunpack.c.l.b16 %v594
    %v960 = vunpack.c.l.b16 %v595
    %v961 = vunpack.c.h.b16 %v595
    %v962 = vunpack.c.l.b16 %v596
    %v963 = vunpack.c.h.b16 %v596
    %v964 = vunpack.c.l.b16 %v597
    %v965 = vunpack.c.h.b16 %v597
    %v966 = vunpack.c.l.b16 %v598
    %v967 = vunpack.c.l.b16 %v599
    %v968 = vunpack.c.h.b16 %v599
    %v969 = vunpack.c.l.b16 %v600
    %v970 = vunpack.c.h.b16 %v600
    %v971 = vunpack.c.l.b16 %v601
    %v972 = vunpack.c.h.b16 %v601
    %v973 = vunpack.c.l.b16 %v602
    %v974 = vunpack.c.l.b16 %v603
    %v975 = vunpack.c.h.b16 %v603
    %v976 = vunpack.c.l.b16 %v604
    %v977 = vunpack.c.h.b16 %v604
    %v978 = vunpack.c.l.b16 %v605
    %v979 = vunpack.c.h.b16 %v605
    %v980 = vunpack.c.l.b16 %v606
    %v981 = vunpack.c.l.b16 %v607
    %v982 = vunpack.c.h.b16 %v607
    %v983 = vunpack.c.l.b16 %v608
    %v984 = vunpack.c.h.b16 %v608
    %v985 = vunpack.c.l.b16 %v609
    %v986 = vunpack.c.h.b16 %v609
    %v987 = vunpack.c.l.b16 %v610
    %v988 = vunpack.c.l.b16 %v611
    %v989 = vunpack.c.h.b16 %v611
    %v990 = vunpack.c.l.b16 %v612
    %v991 = vunpack.c.h.b16 %v612
    %v992 = vunpack.c.l.b16 %v613
    %v993 = vunpack.c.h.b16 %v613
    %v994 = vunpack.c.l.b16 %v614
    %v995 = vunpack.c.l.b16 %v615
    %v996 = vunpack.c.h.b16 %v615
    %v997 = vunpack.c.l.b16 %v616
    %v998 = vunpack.c.h.b16 %v616
    %v999 = vunpack.c.l.b16 %v617
    %v1000 = vunpack.c.h.b16 %v617
    %v1001 = vunpack.c.l.b16 %v618
    %v1002 = vunpack.c.l.b16 %v619
    %v1003 = vunpack.c.h.b16 %v619
    %v1004 = vunpack.c.l.b16 %v620
    %v1005 = vunpack.c.h.b16 %v620
    %v1006 = vunpack.c.l.b16 %v621
    %v1007 = vunpack.c.h.b16 %v621
    %v1008 = vunpack.c.l.b16 %v622
    %v1009 = vunpack.c.l.b16 %v623
    %v1010 = vunpack.c.h.b16 %v623
    %v1011 = vunpack.c.l.b16 %v624
    %v1012 = vunpack.c.h.b16 %v624
    %v1013 = vunpack.c.l.b16 %v625
    %v1014 = vunpack.c.h.b16 %v625
    %v1015 = vunpack.c.l.b16 %v626
    %v1016 = vpack.c.b16 %v799, %v792
    %v1017 = vpack.c.b16 %v800, %v793
    %v1018 = vpack.c.b16 %v801, %v794
    %v1019 = vpack.c.b16 %v802, %v795
    %v1020 = vpack.c.b16 %v803, %v796
    %v1021 = vpack.c.b16 %v804, %v797
    %v1022 = vpack.c.b16 %v805, %v798
    %v1023 = vpack.c.b16 %v813, %v806
    %v1024 = vpack.c.b16 %v814, %v807
    %v1025 = vpack.c.b16 %v815, %v808
    %v1026 = vpack.c.b16 %v816, %v809
    %v1027 = vpack.c.b16 %v817, %v810
    %v1028 = vpack.c.b16 %v818, %v811
    %v1029 = vpack.c.b16 %v819, %v812
    %v1030 = vpack.c.b16 %v827, %v820
    %v1031 = vpack.c.b16 %v828, %v821
    %v1032 = vpack.c.b16 %v829, %v822
    %v1033 = vpack.c.b16 %v830, %v823
    %v1034 = vpack.c.b16 %v831, %v824
    %v1035 = vpack.c.b16 %v832, %v825
    %v1036 = vpack.c.b16 %v833, %v826
    %v1037 = vpack.c.b16 %v841, %v834
    %v1038 = vpack.c.b16 %v842, %v835
    %v1039 = vpack.c.b16 %v843, %v836
    %v1040 = vpack.c.b16 %v844, %v837
    %v1041 = vpack.c.b16 %v845, %v838
    %v1042 = vpack.c.b16 %v846, %v839
    %v1043 = vpack.c.b16 %v847, %v840
    %v1044 = vpack.c.b16 %v855, %v848
    %v1045 = vpack.c.b16 %v856, %v849
    %v1046 = vpack.c.b16 %v857, %v850
    %v1047 = vpack.c.b16 %v858, %v851
    %v1048 = vpack.c.b16 %v859, %v852
    %v1049 = vpack.c.b16 %v860, %v853
    %v1050 = vpack.c.b16 %v861, %v854
    %v1051 = vpack.c.b16 %v869, %v862
    %v1052 = vpack.c.b16 %v870, %v863
    %v1053 = vpack.c.b16 %v871, %v864
    %v1054 = vpack.c.b16 %v872, %v865
    %v1055 = vpack.c.b16 %v873, %v866
    %v1056 = vpack.c.b16 %v874, %v867
    %v1057 = vpack.c.b16 %v875, %v868
    %v1058 = vpack.c.b16 %v883, %v876
    %v1059 = vpack.c.b16 %v884, %v877
    %v1060 = vpack.c.b16 %v885, %v878
    %v1061 = vpack.c.b16 %v886, %v879
    %v1062 = vpack.c.b16 %v887, %v880
    %v1063 = vpack.c.b16 %v888, %v881
    %v1064 = vpack.c.b16 %v889, %v882
    %v1065 = vpack.c.b16 %v897, %v890
    %v1066 = vpack.c.b16 %v898, %v891
    %v1067 = vpack.c.b16 %v899, %v892
    %v1068 = vpack.c.b16 %v900, %v893
    %v1069 = vpack.c.b16 %v901, %v894
    %v1070 = vpack.c.b16 %v902, %v895
    %v1071 = vpack.c.b16 %v903, %v896
    %v1072 = vpack.c.b16 %v911, %v904
    %v1073 = vpack.c.b16 %v912, %v905
    %v1074 = vpack.c.b16 %v913, %v906
    %v1075 = vpack.c.b16 %v914, %v907
    %v1076 = vpack.c.b16 %v915, %v908
    %v1077 = vpack.c.b16 %v916, %v909
    %v1078 = vpack.c.b16 %v917, %v910
    %v1079 = vpack.c.b16 %v925, %v918
    %v1080 = vpack.c.b16 %v926, %v919
    %v1081 = vpack.c.b16 %v927, %v920
    %v1082 = vpack.c.b16 %v928, %v921
    %v1083 = vpack.c.b16 %v929, %v922
    %v1084 = vpack.c.b16 %v930, %v923
    %v1085 = vpack.c.b16 %v931, %v924
    %v1086 = vpack.c.b16 %v939, %v932
    %v1087 = vpack.c.b16 %v940, %v933
    %v1088 = vpack.c.b16 %v941, %v934
    %v1089 = vpack.c.b16 %v942, %v935
    %v1090 = vpack.c.b16 %v943, %v936
    %v1091 = vpack.c.b16 %v944, %v937
    %v1092 = vpack.c.b16 %v945, %v938
    %v1093 = vpack.c.b16 %v953, %v946
    %v1094 = vpack.c.b16 %v954, %v947
    %v1095 = vpack.c.b16 %v955, %v948
    %v1096 = vpack.c.b16 %v956, %v949
    %v1097 = vpack.c.b16 %v957, %v950
    %v1098 = vpack.c.b16 %v958, %v951
    %v1099 = vpack.c.b16 %v959, %v952
    %v1100 = vpack.c.b16 %v967, %v960
    %v1101 = vpack.c.b16 %v968, %v961
    %v1102 = vpack.c.b16 %v969, %v962
    %v1103 = vpack.c.b16 %v970, %v963
    %v1104 = vpack.c.b16 %v971, %v964
    %v1105 = vpack.c.b16 %v972, %v965
    %v1106 = vpack.c.b16 %v973, %v966
    %v1107 = vpack.c.b16 %v981, %v974
    %v1108 = vpack.c.b16 %v982, %v975
    %v1109 = vpack.c.b16 %v983, %v976
    %v1110 = vpack.c.b16 %v984, %v977
    %v1111 = vpack.c.b16 %v985, %v978
    %v1112 = vpack.c.b16 %v986, %v979
    %v1113 = vpack.c.b16 %v987, %v980
    %v1114 = vpack.c.b16 %v995, %v988
    %v1115 = vpack.c.b16 %v996, %v989
    %v1116 = vpack.c.b16 %v997, %v990
    %v1117 = vpack.c.b16 %v998, %v991
    %v1118 = vpack.c.b16 %v999, %v992
    %v1119 = vpack.c.b16 %v1000, %v993
    %v1120 = vpack.c.b16 %v1001, %v994
    %v1121 = vpack.c.b16 %v1009, %v1002
    %v1122 = vpack.c.b16 %v1010, %v1003
    %v1123 = vpack.c.b16 %v1011, %v1004
    %v1124 = vpack.c.b16 %v1012, %v1005
    %v1125 = vpack.c.b16 %v1013, %v1006
    %v1126 = vpack.c.b16 %v1014, %v1007
    %v1127 = vpack.c.b16 %v1015, %v1008
    %1240 = vmatprep.subr.bf16.mxu0 %v1066
    %1241 = vmatpush1.bf16.msra.mxu0 %v1065
    %1242 = vmatprep.subr.bf16.mxu0 %v1059
    %1243 = vmatpush1.bf16.msra.mxu0 %v1058
    %1244 = vmatprep.subr.bf16.mxu0 %v1052
    %1245 = vmatpush1.bf16.msra.mxu0 %v1051
    %1246 = vmatprep.subr.bf16.mxu0 %v1045
    %1247 = vmatpush1.bf16.msra.mxu0 %v1044
    %1248 = vmatprep.subr.bf16.mxu0 %v1038
    %1249 = vmatpush1.bf16.msra.mxu0 %v1037
    %1250 = vmatprep.subr.bf16.mxu0 %v1031
    %1251 = vmatpush1.bf16.msra.mxu0 %v1030
    %1252 = vmatprep.subr.bf16.mxu0 %v1024
    %1253 = vmatpush1.bf16.msra.mxu0 %v1023
    %1254 = vmatprep.subr.bf16.mxu0 %v1017
    %1255 = vmatpush1.bf16.msra.mxu0 %v1016
    %1256 = vmatprep.subr.bf16.mxu0 %v1122
    %1257 = vmatpush2.bf16.msra.mxu0 %v1121
    %1258 = vmatprep.subr.bf16.mxu0 %v1115
    %1259 = vmatpush2.bf16.msra.mxu0 %v1114
    %1260 = vmatprep.subr.bf16.mxu0 %v1108
    %1261 = vmatpush2.bf16.msra.mxu0 %v1107
    %1262 = vmatprep.subr.bf16.mxu0 %v1101
    %1263 = vmatpush2.bf16.msra.mxu0 %v1100
    %1264 = vmatprep.subr.bf16.mxu0 %v1094
    %1265 = vmatpush2.bf16.msra.mxu0 %v1093
    %1266 = vmatprep.subr.bf16.mxu0 %v1087
    %1267 = vmatpush2.bf16.msra.mxu0 %v1086
    %1268 = vmatprep.subr.bf16.mxu0 %v1080
    %1269 = vmatpush2.bf16.msra.mxu0 %v1079
    %1270 = vmatprep.subr.bf16.mxu0 %v1073
    %1271 = vmatpush2.bf16.msra.mxu0 %v1072
    %1272 = vmatprep.mubr.bf16.mxu0 %v498
    %1273 = vmatmul.mubr.bf16.gmra.mxu0 %v497
    %v1274 = vpop.f32.mrf.mxu0
    %v1275 = vadd.f32 %v632, %v1274
    %v1276 = vpop.f32.mrf.mxu0
    %v1277 = vadd.f32 %v636, %v1276
    %v1278 = vpop.f32.mrf.mxu0
    %v1279 = vpop.f32.mrf.mxu0
    %1280 = vdwg.mxu0
    %1281 = vmatprep.subr.bf16.mxu0 %v1068
    %1282 = vmatpush1.bf16.msra.mxu0 %v1067
    %1283 = vmatprep.subr.bf16.mxu0 %v1061
    %1284 = vmatpush1.bf16.msra.mxu0 %v1060
    %1285 = vmatprep.subr.bf16.mxu0 %v1054
    %1286 = vmatpush1.bf16.msra.mxu0 %v1053
    %1287 = vmatprep.subr.bf16.mxu0 %v1047
    %1288 = vmatpush1.bf16.msra.mxu0 %v1046
    %1289 = vmatprep.subr.bf16.mxu0 %v1040
    %1290 = vmatpush1.bf16.msra.mxu0 %v1039
    %1291 = vmatprep.subr.bf16.mxu0 %v1033
    %1292 = vmatpush1.bf16.msra.mxu0 %v1032
    %1293 = vmatprep.subr.bf16.mxu0 %v1026
    %1294 = vmatpush1.bf16.msra.mxu0 %v1025
    %1295 = vmatprep.subr.bf16.mxu0 %v1019
    %1296 = vmatpush1.bf16.msra.mxu0 %v1018
    %1297 = vmatprep.subr.bf16.mxu0 %v1124
    %1298 = vmatpush2.bf16.msra.mxu0 %v1123
    %1299 = vmatprep.subr.bf16.mxu0 %v1117
    %1300 = vmatpush2.bf16.msra.mxu0 %v1116
    %1301 = vmatprep.subr.bf16.mxu0 %v1110
    %1302 = vmatpush2.bf16.msra.mxu0 %v1109
    %1303 = vmatprep.subr.bf16.mxu0 %v1103
    %1304 = vmatpush2.bf16.msra.mxu0 %v1102
    %1305 = vmatprep.subr.bf16.mxu0 %v1096
    %1306 = vmatpush2.bf16.msra.mxu0 %v1095
    %1307 = vmatprep.subr.bf16.mxu0 %v1089
    %1308 = vmatpush2.bf16.msra.mxu0 %v1088
    %1309 = vmatprep.subr.bf16.mxu0 %v1082
    %1310 = vmatpush2.bf16.msra.mxu0 %v1081
    %1311 = vmatprep.subr.bf16.mxu0 %v1075
    %1312 = vmatpush2.bf16.msra.mxu0 %v1074
    %1313 = vmatprep.mubr.bf16.mxu0 %v498
    %1314 = vmatmul.mubr.bf16.gmra.mxu0 %v497
    %v1315 = vpop.f32.mrf.mxu0
    %v1316 = vadd.f32 %v640, %v1315
    %v1317 = vpop.f32.mrf.mxu0
    %v1318 = vadd.f32 %v644, %v1317
    %v1319 = vpop.f32.mrf.mxu0
    %v1320 = vpop.f32.mrf.mxu0
    %1321 = vdwg.mxu0
    %1322 = vmatprep.subr.bf16.mxu0 %v1070
    %1323 = vmatpush1.bf16.msra.mxu0 %v1069
    %1324 = vmatprep.subr.bf16.mxu0 %v1063
    %1325 = vmatpush1.bf16.msra.mxu0 %v1062
    %1326 = vmatprep.subr.bf16.mxu0 %v1056
    %1327 = vmatpush1.bf16.msra.mxu0 %v1055
    %1328 = vmatprep.subr.bf16.mxu0 %v1049
    %1329 = vmatpush1.bf16.msra.mxu0 %v1048
    %1330 = vmatprep.subr.bf16.mxu0 %v1042
    %1331 = vmatpush1.bf16.msra.mxu0 %v1041
    %1332 = vmatprep.subr.bf16.mxu0 %v1035
    %1333 = vmatpush1.bf16.msra.mxu0 %v1034
    %1334 = vmatprep.subr.bf16.mxu0 %v1028
    %1335 = vmatpush1.bf16.msra.mxu0 %v1027
    %1336 = vmatprep.subr.bf16.mxu0 %v1021
    %1337 = vmatpush1.bf16.msra.mxu0 %v1020
    %1338 = vmatprep.subr.bf16.mxu0 %v1126
    %1339 = vmatpush2.bf16.msra.mxu0 %v1125
    %1340 = vmatprep.subr.bf16.mxu0 %v1119
    %1341 = vmatpush2.bf16.msra.mxu0 %v1118
    %1342 = vmatprep.subr.bf16.mxu0 %v1112
    %1343 = vmatpush2.bf16.msra.mxu0 %v1111
    %1344 = vmatprep.subr.bf16.mxu0 %v1105
    %1345 = vmatpush2.bf16.msra.mxu0 %v1104
    %1346 = vmatprep.subr.bf16.mxu0 %v1098
    %1347 = vmatpush2.bf16.msra.mxu0 %v1097
    %1348 = vmatprep.subr.bf16.mxu0 %v1091
    %1349 = vmatpush2.bf16.msra.mxu0 %v1090
    %1350 = vmatprep.subr.bf16.mxu0 %v1084
    %1351 = vmatpush2.bf16.msra.mxu0 %v1083
    %1352 = vmatprep.subr.bf16.mxu0 %v1077
    %1353 = vmatpush2.bf16.msra.mxu0 %v1076
    %1354 = vmatprep.mubr.bf16.mxu0 %v498
    %1355 = vmatmul.mubr.bf16.gmra.mxu0 %v497
    %v1356 = vpop.f32.mrf.mxu0
    %v1357 = vadd.f32 %v648, %v1356
    %v1358 = vpop.f32.mrf.mxu0
    %v1359 = vadd.f32 %v652, %v1358
    %v1360 = vpop.f32.mrf.mxu0
    %v1361 = vpop.f32.mrf.mxu0
    %1362 = vdwg.mxu0
    %1363 = vmatprep.subr.bf16.mxu0 0
    %1364 = vmatpush1.bf16.msra.mxu0 %v1071
    %1365 = vmatprep.subr.bf16.mxu0 0
    %1366 = vmatpush1.bf16.msra.mxu0 %v1064
    %1367 = vmatprep.subr.bf16.mxu0 0
    %1368 = vmatpush1.bf16.msra.mxu0 %v1057
    %1369 = vmatprep.subr.bf16.mxu0 0
    %1370 = vmatpush1.bf16.msra.mxu0 %v1050
    %1371 = vmatprep.subr.bf16.mxu0 0
    %1372 = vmatpush1.bf16.msra.mxu0 %v1043
    %1373 = vmatprep.subr.bf16.mxu0 0
    %1374 = vmatpush1.bf16.msra.mxu0 %v1036
    %1375 = vmatprep.subr.bf16.mxu0 0
    %1376 = vmatpush1.bf16.msra.mxu0 %v1029
    %1377 = vmatprep.subr.bf16.mxu0 0
    %1378 = vmatpush1.bf16.msra.mxu0 %v1022
    %1379 = vmatprep.subr.bf16.mxu0 0
    %1380 = vmatpush2.bf16.msra.mxu0 %v1127
    %1381 = vmatprep.subr.bf16.mxu0 0
    %1382 = vmatpush2.bf16.msra.mxu0 %v1120
    %1383 = vmatprep.subr.bf16.mxu0 0
    %1384 = vmatpush2.bf16.msra.mxu0 %v1113
    %1385 = vmatprep.subr.bf16.mxu0 0
    %1386 = vmatpush2.bf16.msra.mxu0 %v1106
    %1387 = vmatprep.subr.bf16.mxu0 0
    %1388 = vmatpush2.bf16.msra.mxu0 %v1099
    %1389 = vmatprep.subr.bf16.mxu0 0
    %1390 = vmatpush2.bf16.msra.mxu0 %v1092
    %1391 = vmatprep.subr.bf16.mxu0 0
    %1392 = vmatpush2.bf16.msra.mxu0 %v1085
    %1393 = vmatprep.subr.bf16.mxu0 0
    %1394 = vmatpush2.bf16.msra.mxu0 %v1078
    %1395 = vmatprep.mubr.bf16.mxu0 %v498
    %1396 = vmatmul.mubr.bf16.gmra.mxu0 %v497
    %v1397 = vpop.f32.mrf.mxu0
    %v1398 = vadd.f32 %v656, %v1397
    %v1399 = vpop.f32.mrf.mxu0
    %v1400 = vpop.f32.mrf.mxu0
    %v1401 = vpop.f32.mrf.mxu0
    %1402 = vdwg.mxu0
    %v1403 = vsub.f32 0.0, %v1275
    %v1404 = vsub.f32 0.0, %v1277
    %v1405 = vsub.f32 0.0, %v1316
    %v1406 = vsub.f32 0.0, %v1318
    %v1407 = vsub.f32 0.0, %v1357
    %v1408 = vsub.f32 0.0, %v1359
    %v1409 = vsub.f32 0.0, %v1398
    %v1410 = vmul.f32 %v1403, 1.442695
    %v1411 = vpow.pop %v1410
    %v1412 = vmul.f32 %v1404, 1.442695
    %v1413 = vpow.pop %v1412
    %v1414 = vmul.f32 %v1405, 1.442695
    %v1415 = vpow.pop %v1414
    %v1416 = vmul.f32 %v1406, 1.442695
    %v1417 = vpow.pop %v1416
    %v1418 = vmul.f32 %v1407, 1.442695
    %v1419 = vpow.pop %v1418
    %v1420 = vmul.f32 %v1408, 1.442695
    %v1421 = vpow.pop %v1420
    %v1422 = vmul.f32 %v1409, 1.442695
    %v1423 = vpow.pop %v1422
    %v1424 = vadd.f32 %v1411, 1.0
    %v1425 = vadd.f32 %v1413, 1.0
    %v1426 = vadd.f32 %v1415, 1.0
    %v1427 = vadd.f32 %v1417, 1.0
    %v1428 = vadd.f32 %v1419, 1.0
    %v1429 = vadd.f32 %v1421, 1.0
    %v1430 = vadd.f32 %v1423, 1.0
    %v1431 = vrcp.pop %v1424
    %v1432 = vrcp.pop %v1425
    %v1433 = vrcp.pop %v1426
    %v1434 = vrcp.pop %v1427
    %v1435 = vrcp.pop %v1428
    %v1436 = vrcp.pop %v1429
    %v1437 = vrcp.pop %v1430
    %1438 = vst [vmem:[%s12] sm:$0xff] %v1431
    %1439 = vst [vmem:[%s12 + $0x8] sm:$0xff] %v1432
    %1440 = vst [vmem:[%s12 + $0x10] sm:$0xff] %v1433
    %1441 = vst [vmem:[%s12 + $0x18] sm:$0xff] %v1434
    %1442 = vst [vmem:[%s12 + $0x20] sm:$0xff] %v1435
    %1443 = vst [vmem:[%s12 + $0x28] sm:$0xff] %v1436
    %1444 = vst [vmem:[%s12 + $0x30] sm:$0xff] %v1437
    %v1445 = vadd.f32 %v222, 1.0
    %v1446 = vmul.f32 %v220, %v220
    %v1447 = vsub.f32 %v1445, %v1446
    %v1448 = vmul.f32 %v228, %v228
    %v1449 = vsub.f32 %v1447, %v1448
    %1450 = vadd.xlane.f32.xlu0 %v1449
    %v1451 = vpop.xlane.xlu0 %1450
    %v1452 = vmul.f32 %v1451, -0.5
    %vm1453 = vcmask 7168
    %1454 = vst.msk [vmem:[%s13] sm:$0xff] %vm1453, %v1452
    // Predicated region
    $region54: #{mnist_vae_forward.5} parent=1 // pred_check
      _
    $region55: #{mnist_vae_forward.5} parent=1 // pred_check_branch
      %1456 = sbr.rel (0) target = $region57
    $region56: #{mnist_vae_forward.5} parent=1 // pred_region
      _
    $region57: #{mnist_vae_forward.5} parent=1 // pred_fallthru
      _
    // Predicated region
    $region58: #{mnist_vae_forward.5} parent=1 // pred_check
      _
    $region59: #{mnist_vae_forward.5} parent=1 // pred_check_branch
      %1458 = sbr.rel (0) target = $region61
    $region60: #{mnist_vae_forward.5} parent=1 // pred_region
      _
    $region61: #{mnist_vae_forward.5} parent=1 // pred_fallthru
      _
    // Predicated region
    $region62: #{mnist_vae_forward.5} parent=1 // pred_check
      _
    $region63: #{mnist_vae_forward.5} parent=1 // pred_check_branch
      %1460 = sbr.rel (0) target = $region65
    $region64: #{mnist_vae_forward.5} parent=1 // pred_region
      _
    $region65: #{mnist_vae_forward.5} parent=1 // pred_fallthru
      _
    // Predicated region
    $region66: #{mnist_vae_forward.5} parent=1 // pred_check
      _
    $region67: #{mnist_vae_forward.5} parent=1 // pred_check_branch
      %1462 = sbr.rel (0) target = $region69
    $region68: #{mnist_vae_forward.5} parent=1 // pred_region
      _
    $region69: #{mnist_vae_forward.5} parent=1 // pred_fallthru
      _
    %1463 = vsyncpa [#allocation3], 1

</llo_original>
